<compile_context>
chip_gen: v7x
topology: tpu7x:2x2x1
jax: 0.10.0
libtpu: 0.0.40
codegen_flags: <defaults>
</compile_context>

<pallas_src>
import functools

import jax
import jax.numpy as jnp
from jax import lax
from jax.experimental import pallas as pl
from jax.experimental.pallas import tpu as pltpu


_NEG_INIT = -1e30  # finite "-inf" so exp(m_prev - m_new) never sees inf - inf


# ---------------------------------------------------------------------------
# Kernel A: fused projection (x @ W) with full-width lane-dense output.
# ---------------------------------------------------------------------------
def _proj_kernel(x_ref, w_ref, out_ref):
    out_ref[...] = jnp.dot(
        x_ref[...], w_ref[...], preferred_element_type=jnp.float32
    ).astype(out_ref.dtype)


def _projection(x_bf16, w_bf16, *, ts, vmem_limit):
    B, S, D = x_bf16.shape
    W = w_bf16.shape[1]
    flops = int(2 * B * S * D * W)
    bytes_accessed = int(2 * (B * S * D + D * W + B * S * W))
    return pl.pallas_call(
        _proj_kernel,
        out_shape=jax.ShapeDtypeStruct((B, S, W), jnp.bfloat16),
        grid_spec=pltpu.PrefetchScalarGridSpec(
            num_scalar_prefetch=0,
            grid=(B, S // ts),
            in_specs=[
                pl.BlockSpec((None, ts, D), lambda b, i: (b, i, 0)),
                # TODO(synk): single-buffer this grid-invariant weight via
                # pipeline_mode=pl.Buffered(1) once stable on the target jax.
                pl.BlockSpec((D, W), lambda b, i: (0, 0)),
            ],
            out_specs=pl.BlockSpec((None, ts, W), lambda b, i: (b, i, 0)),
        ),
        compiler_params=pltpu.CompilerParams(
            dimension_semantics=("parallel", "parallel"),
            vmem_limit_bytes=vmem_limit),
        cost_estimate=pl.CostEstimate(flops=flops, transcendentals=0,
                                      bytes_accessed=bytes_accessed),
    )(x_bf16, w_bf16)


# ---------------------------------------------------------------------------
# Kernel B: flash attention (online softmax) + fused output projection.
# ---------------------------------------------------------------------------
def _flash_attn_kernel(q_ref, k_ref, v_ref, mask_ref, wo_ref, bo_ref, out_ref,
                       m_sc, l_sc, acc_sc, *, heads, head_dim):
    ki = pl.program_id(2)
    nk = pl.num_programs(2)

    @pl.when(ki == 0)
    def _init():
        m_sc[...] = jnp.full(m_sc.shape, _NEG_INIT, dtype=m_sc.dtype)
        l_sc[...] = jnp.zeros(l_sc.shape, dtype=l_sc.dtype)
        acc_sc[...] = jnp.zeros(acc_sc.shape, dtype=acc_sc.dtype)

    # Additive mask for this (q-tile, kv-tile); cast once per KV step.
    # Shape (tq, tkv) or (1, tkv) — the latter broadcasts over the q-tile.
    m_add = mask_ref[...].astype(jnp.float32)

    # Static per-head loop; Q is already scaled (scale folded into the weight).
    for hi in range(heads):
        sl = slice(hi * head_dim, (hi + 1) * head_dim)
        # scores: (tq, hd) x (tkv, hd) contracted on hd -> (tq, tkv), f32 acc.
        s = lax.dot_general(q_ref[:, sl], k_ref[:, sl],
                            dimension_numbers=(((1,), (1,)), ((), ())),
                            preferred_element_type=jnp.float32)
        s = s + m_add
        m_prev = m_sc[hi]                                           # (tq, 1)
        m_new = jnp.maximum(m_prev, jnp.max(s, axis=-1, keepdims=True))
        alpha = jnp.exp(m_prev - m_new)
        p = jnp.exp(s - m_new)
        l_sc[hi] = alpha * l_sc[hi] + jnp.sum(p, axis=-1, keepdims=True)
        pv = jnp.dot(p.astype(jnp.bfloat16), v_ref[:, sl],
                     preferred_element_type=jnp.float32)            # (tq, hd)
        acc_sc[:, sl] = alpha * acc_sc[:, sl] + pv
        m_sc[hi] = m_new

    @pl.when(ki == nk - 1)
    def _finalize():
        # Normalize each head in place (lane-dense accumulator), then one deep
        # (tq, inner) @ (inner, out) output projection instead of `heads`
        # K=head_dim matmuls.
        for hi in range(heads):
            sl = slice(hi * head_dim, (hi + 1) * head_dim)
            acc_sc[:, sl] = acc_sc[:, sl] * pl.reciprocal(l_sc[hi], approx=True)
        o = jnp.dot(acc_sc[...].astype(jnp.bfloat16), wo_ref[...],
                    preferred_element_type=jnp.float32)
        o = o + bo_ref[...].astype(jnp.float32)
        out_ref[...] = o.astype(out_ref.dtype)


# ---------------------------------------------------------------------------
# Wrapper: TtAttention.forward equivalent.
# ---------------------------------------------------------------------------
def _pick_block(desired, total):
    b = min(desired, total)
    while b > 8 and total % b != 0:
        b //= 2
    if total % b != 0:
        b = total
    return b


def tt_attention(hidden_states, attention_mask, wq, wk, wv, wo, bo,
                 encoder_hidden_states=None, heads=8, *,
                 q_block=256, kv_block=256, proj_block=512,
                 vmem_limit=48 * 1024 * 1024):
    self_attention = encoder_hidden_states is None
    if self_attention:
        encoder_hidden_states = hidden_states

    B, Sq, D = hidden_states.shape
    _, Skv, _ = encoder_hidden_states.shape
    inner_dim = wq.shape[1]
    out_dim = wo.shape[1]
    assert inner_dim % heads == 0, "inner_dim must be divisible by heads"
    assert inner_dim % 128 == 0, "inner_dim must be a multiple of 128"
    assert attention_mask.shape[-1] == Skv
    head_dim = inner_dim // heads
    out_dtype = hidden_states.dtype

    tq = _pick_block(q_block, Sq)
    tkv = _pick_block(kv_block, Skv)        # keep 128 on v5e if MXU-bound
    ts_q = _pick_block(proj_block, Sq)
    ts_kv = _pick_block(proj_block, Skv)
    assert Sq % tq == 0 and Skv % tkv == 0
    assert tkv % 128 == 0 or tkv == Skv, "tkv must be lane-tile friendly"

    scale = 1.0 / float(head_dim) ** 0.5

    # bf16 MXU inputs (accumulation stays f32 inside the kernels); softmax
    # scale folded into the Q weight once.
    hs_bf = hidden_states.astype(jnp.bfloat16)
    wq_bf = (wq * scale).astype(jnp.bfloat16)
    wk_bf = wk.astype(jnp.bfloat16)
    wv_bf = wv.astype(jnp.bfloat16)
    wo_bf = wo.astype(jnp.bfloat16)
    bo2d = bo.reshape(1, out_dim).astype(jnp.float32)
    mask_bf = attention_mask.astype(jnp.bfloat16)   # halves mask HBM stream

    # --- projections ---------------------------------------------------------
    if self_attention:
        # One fused (D, 3*inner) matmul per tile: reads x once for Q/K/V.
        w_qkv = jnp.concatenate([wq_bf, wk_bf, wv_bf], axis=1)
        qkv = _projection(hs_bf, w_qkv, ts=ts_q, vmem_limit=vmem_limit)
        q_src, kv_src = qkv, qkv
        q_blk, k_blk, v_blk = 0, 1, 2
    else:
        enc_bf = encoder_hidden_states.astype(jnp.bfloat16)
        q_src = _projection(hs_bf, wq_bf, ts=ts_q, vmem_limit=vmem_limit)
        w_kv = jnp.concatenate([wk_bf, wv_bf], axis=1)
        kv_src = _projection(enc_bf, w_kv, ts=ts_kv, vmem_limit=vmem_limit)
        q_blk, k_blk, v_blk = 0, 0, 1

    # --- flash attention + output projection ---------------------------------
    n_q = Sq // tq
    n_kv = Skv // tkv

    mask_b_bcast = attention_mask.shape[0] == 1
    mask_q_bcast = attention_mask.shape[2] == 1
    mq = 1 if mask_q_bcast else tq

    def q_map(b, qi, ki):
        return (b, qi, q_blk)

    def k_map(b, qi, ki):
        return (b, ki, k_blk)

    def v_map(b, qi, ki):
        return (b, ki, v_blk)

    def mask_map(b, qi, ki):
        return (0 if mask_b_bcast else b, 0, 0 if mask_q_bcast else qi, ki)

    kernel = functools.partial(_flash_attn_kernel, heads=heads,
                               head_dim=head_dim)

    flops = int(4 * B * heads * Sq * Skv * head_dim      # QK^T + PV
                + 2 * B * Sq * inner_dim * out_dim)      # output projection
    bytes_accessed = int(
        2 * B * Sq * inner_dim                           # Q (bf16)
        + 2 * 2 * n_q * B * Skv * inner_dim              # K, V per q-tile
        + 2 * B * (1 if mask_q_bcast else Sq) * Skv      # bf16 mask
        + 2 * inner_dim * out_dim + 4 * out_dim          # weights + bias
        + B * Sq * out_dim * jnp.dtype(out_dtype).itemsize)

    out = pl.pallas_call(
        kernel,
        out_shape=jax.ShapeDtypeStruct((B, Sq, out_dim), out_dtype),
        grid_spec=pltpu.PrefetchScalarGridSpec(
            num_scalar_prefetch=0,
            grid=(B, n_q, n_kv),
            in_specs=[
                pl.BlockSpec((None, tq, inner_dim), q_map),
                pl.BlockSpec((None, tkv, inner_dim), k_map),
                pl.BlockSpec((None, tkv, inner_dim), v_map),
                pl.BlockSpec((None, None, mq, tkv), mask_map),
                pl.BlockSpec((inner_dim, out_dim), lambda b, qi, ki: (0, 0)),
                pl.BlockSpec((1, out_dim), lambda b, qi, ki: (0, 0)),
            ],
            out_specs=pl.BlockSpec((None, tq, out_dim),
                                   lambda b, qi, ki: (b, qi, 0)),
            scratch_shapes=[
                pltpu.VMEM((heads, tq, 1), jnp.float32),    # running max
                pltpu.VMEM((heads, tq, 1), jnp.float32),    # running sum
                pltpu.VMEM((tq, inner_dim), jnp.float32),   # lane-dense PV acc
            ],
        ),
        compiler_params=pltpu.CompilerParams(
            dimension_semantics=("parallel", "parallel", "arbitrary"),
            vmem_limit_bytes=vmem_limit),
        cost_estimate=pl.CostEstimate(flops=flops,
                                      transcendentals=int(B * heads * Sq * Skv),
                                      bytes_accessed=bytes_accessed),
    )(q_src, kv_src, kv_src, mask_bf, wo_bf, bo2d)

    return out


# ---------------------------------------------------------------------------
# Pure-JAX reference (f32) mirroring TtAttention.forward semantics.
# ---------------------------------------------------------------------------
def _reference_attention(hs, enc, mask, wq, wk, wv, wo, bo, heads):
    B, Sq, _ = hs.shape
    inner = wq.shape[1]
    hd = inner // heads
    q = hs @ wq
    k = enc @ wk
    v = enc @ wv
    q = q.reshape(B, Sq, heads, hd).transpose(0, 2, 1, 3)
    k = k.reshape(B, -1, heads, hd).transpose(0, 2, 1, 3)
    v = v.reshape(B, -1, heads, hd).transpose(0, 2, 1, 3)
    s = jnp.einsum("bhqd,bhkd->bhqk", q, k) * (1.0 / float(hd) ** 0.5) + mask
    p = jax.nn.softmax(s, axis=-1)
    o = jnp.einsum("bhqk,bhkd->bhqd", p, v)
    o = o.transpose(0, 2, 1, 3).reshape(B, Sq, inner)
    return o @ wo + bo


if __name__ == "__main__":
    # Small shapes consistent with the module (dim_head=64):
    #   query_dim = 128, heads = 2, dim_head = 64 -> inner_dim = out_dim = 128
    #   batch = 2, Sq = Skv = 512 (self-attention) so default tq = tkv = 256
    #   exercises multiple q-tiles and multiple online-softmax KV steps.
    B, Sq, query_dim = 2, 512, 128
    heads, dim_head = 2, 64
    inner_dim = heads * dim_head
    out_dim = query_dim
    Skv = Sq  # self-attention

    key = jax.random.PRNGKey(0)
    k_hs, k_mask, k_wq, k_wk, k_wv, k_wo, k_bo = jax.random.split(key, 7)

    hidden_states = jax.random.normal(k_hs, (B, Sq, query_dim), dtype=jnp.float32)
    attention_mask = 0.1 * jax.random.normal(k_mask, (B, 1, Sq, Skv),
                                             dtype=jnp.float32)

    # Deterministic synthetic parameters (state_dict replacement), [in, out] layout.
    wq = 0.05 * jax.random.normal(k_wq, (query_dim, inner_dim), dtype=jnp.float32)
    wk = 0.05 * jax.random.normal(k_wk, (query_dim, inner_dim), dtype=jnp.float32)
    wv = 0.05 * jax.random.normal(k_wv, (query_dim, inner_dim), dtype=jnp.float32)
    wo = 0.05 * jax.random.normal(k_wo, (inner_dim, out_dim), dtype=jnp.float32)
    bo = 0.05 * jax.random.normal(k_bo, (out_dim,), dtype=jnp.float32)

    out = tt_attention(hidden_states, attention_mask, wq, wk, wv, wo, bo,
                       encoder_hidden_states=None, heads=heads)
    out = jax.block_until_ready(out)

    ref = _reference_attention(hidden_states, hidden_states, attention_mask,
                               wq, wk, wv, wo, bo, heads)
    ref = jax.block_until_ready(ref)

    assert out.shape == (B, Sq, out_dim), out.shape
    max_err = float(jnp.max(jnp.abs(out - ref)))
    # bf16 matmul inputs / bf16 mask / approx reciprocal (f32 accumulation)
    # -> loosened tolerance vs the f32 reference.
    assert jnp.allclose(out, ref, rtol=3e-2, atol=3e-2), f"max abs err {max_err}"

    print("KERNEL_OK")
</pallas_src>

<mosaic_0001>
module attributes {stable_mosaic.version = 11 : i64} {
  func.func @_proj_kernel(%arg0: i32, %arg1: i32, %arg2: memref<1x512x128xbf16, #tpu.memory_space<vmem>>, %arg3: memref<128x384xbf16, #tpu.memory_space<vmem>>, %arg4: memref<1x512x384xbf16, #tpu.memory_space<vmem>>) attributes {dimension_semantics = [#tpu.dimension_semantics<parallel>, #tpu.dimension_semantics<parallel>], iteration_bounds = array<i64: 2, 1>, scalar_prefetch = 0 : i64, scratch_operands = 0 : i64, tpu.core_type = #tpu.core_type<tc>, window_params = [{transform_indices = @transform_0, window_bounds = array<i64: 1, 512, 128>}, {pipeline_mode = #tpu.pipeline_mode<synchronous>, transform_indices = @transform_1, window_bounds = array<i64: 128, 384>}, {transform_indices = @transform_2, window_bounds = array<i64: 1, 512, 384>}]} {
    %c0 = arith.constant 0 : index
    %c0_0 = arith.constant 0 : index
    %c0_1 = arith.constant 0 : index
    %0 = vector.load %arg2[%c0, %c0_0, %c0_1] : memref<1x512x128xbf16, #tpu.memory_space<vmem>>, vector<1x512x128xbf16>
    %1 = vector.shape_cast %0 : vector<1x512x128xbf16> to vector<512x128xbf16>
    %c0_2 = arith.constant 0 : index
    %c0_3 = arith.constant 0 : index
    %2 = vector.load %arg3[%c0_2, %c0_3] : memref<128x384xbf16, #tpu.memory_space<vmem>>, vector<128x384xbf16>
    %cst = arith.constant dense<0.000000e+00> : vector<512x384xf32>
    %3 = tpu.matmul %1, %2, %cst {dimension_numbers = #tpu.dot_dimension_numbers<[1], [0], [0], [1], [0, 0, 1, 1], [], []>} : vector<512x128xbf16>, vector<128x384xbf16>, vector<512x384xf32> -> vector<512x384xf32>
    %4 = arith.truncf %3 : vector<512x384xf32> to vector<512x384xbf16>
    %c0_4 = arith.constant 0 : index
    %c0_5 = arith.constant 0 : index
    %c0_6 = arith.constant 0 : index
    %5 = vector.load %arg4[%c0_4, %c0_5, %c0_6] : memref<1x512x384xbf16, #tpu.memory_space<vmem>>, vector<1x512x384xbf16>
    %6 = vector.shape_cast %5 : vector<1x512x384xbf16> to vector<512x384xbf16>
    %7 = vector.shape_cast %4 : vector<512x384xbf16> to vector<1x512x384xbf16>
    tpu.vector_store %arg4[%c0_4, %c0_5, %c0_6], %7 {strides = array<i32>} : memref<1x512x384xbf16, #tpu.memory_space<vmem>>, vector<1x512x384xbf16>,
    return
  }
  func.func @transform_0(%arg0: i32, %arg1: i32) -> (i32, i32, i32) {
    %c0_i32 = arith.constant 0 : i32
    %c0_i32_0 = arith.constant 0 : i32
    return %arg0, %arg1, %c0_i32 : i32, i32, i32
  }
  func.func @transform_1(%arg0: i32, %arg1: i32) -> (i32, i32) {
    %c0_i32 = arith.constant 0 : i32
    %c0_i32_0 = arith.constant 0 : i32
    %c0_i32_1 = arith.constant 0 : i32
    return %c0_i32, %c0_i32_0 : i32, i32
  }
  func.func @transform_2(%arg0: i32, %arg1: i32) -> (i32, i32, i32) {
    %c0_i32 = arith.constant 0 : i32
    %c0_i32_0 = arith.constant 0 : i32
    return %arg0, %arg1, %c0_i32 : i32, i32, i32
  }
}

</mosaic_0001>

<llo_original>
// kernel: tpu_custom_call.1
$region0: #{tpu_custom_call.1}
  #allocation0 [shape = 'u32[]', space=smem, size = 0x4, offset = 0x4, fixed_abs, tag = 'smem constant byte address 0x4 - core index']
  #allocation1 [shape = 'u32[144,128]{1,0:T(1,128)}', space=vmem, size = 0x12000, scoped, tag = 'internal scratch']
  %s0 = inlined_call_operand.hbm [shape: bf16[2,512,128], index: 0, kind: input, shape index: {}]
  %s1 = inlined_call_operand.hbm [shape: bf16[128,384], index: 1, kind: input, shape index: {}]
  %s2 = inlined_call_operand.hbm [shape: bf16[2,512,384], index: 2, kind: output, shape index: {}]
  %s3 = sld [smem:[#allocation0]]
  $region49: #{tpu_custom_call.1} parent=0
    _
  %s5 = ssub.s32 1, %s3
  %s6 = scalar_select 0, %s5, %s3
  $region1: #{tpu_custom_call.1} parent=0
    #allocation2 [shape = 'u8[262144]{0}', space=vmem, size = 0x40000, scoped, tag = 'input window, operand 0']
    #allocation3 [shape = 's32[2]{0}', space=sflag, size = 0x8, scoped, tag = 'scoped memory for tpu_custom_call.1']
    #allocation4 [shape = 's32[2]{0}', space=sflag, size = 0x8, scoped, tag = 'scoped memory for tpu_custom_call.1']
    #allocation5 [shape = 'u8[98304]{0}', space=vmem, size = 0x18000, scoped, tag = 'input window, operand 1, single buffered']
    #allocation6 [shape = 's32[1]{0}', space=sflag, size = 0x4, scoped, tag = 'scoped memory for tpu_custom_call.1']
    #allocation7 [shape = 'u8[786432]{0}', space=vmem, size = 0xc0000, scoped, tag = 'output window, operand 0']
    %7 = vsyncpa [#allocation3], 0
    %s8 = scalar_lea.sflag [#allocation3], 1
    %9 = vsyncpa %s8, 0
    %10 = vsyncpa [#allocation6], 0
    %11 = vsyncpa [#allocation4], 0
    %s12 = scalar_lea.sflag [#allocation4], 1
    %13 = vsyncpa %s12, 0
    loop: start=0, step=1, limit=4
    $region2: #{tpu_custom_call.1} parent=1 // loop_pre_header
      _
    $region3: #{tpu_custom_call.1} parent=1 // loop_header
      %s15 = sphi 0, %s19
      %p16 = scmp.ge.s32.totalorder %s15, 4
      %s22 = sphi 0, %s34
      %s23 = sphi 0, %s30
      %s24 = sphi 0, %s22
      %s25 = sphi 0, %s23
      %s26 = sphi 0, %s24
      %s27 = sphi 0, %s25
      %s39 = sphi 0, %s41
      %s42 = sphi 0, %s39
      %s43 = sphi 0, %s42
      %s59 = sphi 0, %s43
      %s63 = sphi 0, %s63
      %s65 = sphi 0, %s63
      %s66 = sphi 0, %s65
      %s80 = sphi 0, %s66
      %s88 = sphi 0, %s90
      %s91 = sphi 0, %s88
      %s92 = sphi 0, %s91
      %s108 = sphi 0, %s92
    $region4: #{tpu_custom_call.1} parent=1 // loop_header_branch
      %18 = sbr.rel (%p16) target = $region8
    $region5: #{tpu_custom_call.1} parent=1 // loop_body
      %s20 = ssub.s32 %s15, 1
      %s21 = ssub.s32 %s15, 2
      %s28 = sadd.s32 1, %s23
      %p29 = scmp.ge.s32.totalorder %s28, 1
      %s30 = scalar_select %p29, 0, %s28
      %s31 = sadd.s32 1, %s22
      %s32 = scalar_select %p29, %s31, %s22
      %p33 = scmp.ge.s32.totalorder %s32, 2
      %s34 = scalar_select %p33, 0, %s32
      %s35 = ssub.s32 %s22, %s34
      %s36 = ssub.s32 %s23, %s30
      %s37 = sor.u32 %s35, %s36
      %p38 = scmp.eq.s32.totalorder %s37, 0
      %s40 = sadd.s32 %s39, 1
      %s41 = scalar_select %p38, %s39, %s40
      %p44 = pneg %p38
      %p45 = scmp.eq.s32.totalorder %s15, 1
      %p46 = por %p44, %p45
      %p47 = scmp.ne.s32.totalorder %s39, %s42
      %p48 = scmp.eq.s32.totalorder %s15, 0
      %p49 = por %p47, %p48
      %p50 = scmp.ne.s32.totalorder %s39, %s42
      %p51 = scmp.eq.s32.totalorder %s20, 1
      %p52 = por %p50, %p51
      %p53 = scmp.ne.s32.totalorder %s42, %s43
      %p54 = scmp.eq.s32.totalorder %s20, 0
      %p55 = por %p53, %p54
      %p56 = scmp.ne.s32.totalorder %s42, %s43
      %p57 = scmp.eq.s32.totalorder %s21, 1
      %p58 = por %p56, %p57
      %p60 = scmp.ne.s32.totalorder %s43, %s59
      %p61 = scmp.eq.s32.totalorder %s21, 0
      %p62 = por %p60, %p61
      %s64 = sadd.s32 %s63, 1
      %p67 = scmp.eq.s32.totalorder %s15, 1
      %p68 = scmp.ne.s32.totalorder %s63, %s65
      %p69 = scmp.eq.s32.totalorder %s15, 0
      %p70 = por %p68, %p69
      %p71 = scmp.ne.s32.totalorder %s63, %s65
      %p72 = scmp.eq.s32.totalorder %s20, 1
      %p73 = por %p71, %p72
      %p74 = scmp.ne.s32.totalorder %s65, %s66
      %p75 = scmp.eq.s32.totalorder %s20, 0
      %p76 = por %p74, %p75
      %p77 = scmp.ne.s32.totalorder %s65, %s66
      %p78 = scmp.eq.s32.totalorder %s21, 1
      %p79 = por %p77, %p78
      %p81 = scmp.ne.s32.totalorder %s66, %s80
      %p82 = scmp.eq.s32.totalorder %s21, 0
      %p83 = por %p81, %p82
      %s84 = ssub.s32 %s22, %s34
      %s85 = ssub.s32 %s23, %s30
      %s86 = sor.u32 %s84, %s85
      %p87 = scmp.eq.s32.totalorder %s86, 0
      %s89 = sadd.s32 %s88, 1
      %s90 = scalar_select %p87, %s88, %s89
      %p93 = pneg %p87
      %p94 = scmp.eq.s32.totalorder %s15, 1
      %p95 = por %p93, %p94
      %p96 = scmp.ne.s32.totalorder %s88, %s91
      %p97 = scmp.eq.s32.totalorder %s15, 0
      %p98 = por %p96, %p97
      %p99 = scmp.ne.s32.totalorder %s88, %s91
      %p100 = scmp.eq.s32.totalorder %s20, 1
      %p101 = por %p99, %p100
      %p102 = scmp.ne.s32.totalorder %s91, %s92
      %p103 = scmp.eq.s32.totalorder %s20, 0
      %p104 = por %p102, %p103
      %p105 = scmp.ne.s32.totalorder %s91, %s92
      %p106 = scmp.eq.s32.totalorder %s21, 1
      %p107 = por %p105, %p106
      %p109 = scmp.ne.s32.totalorder %s92, %s108
      %p110 = scmp.eq.s32.totalorder %s21, 0
      %p111 = por %p109, %p110
      %p112 = scmp.le.s32.totalorder 1, %s15
      %p113 = scmp.lt.s32.totalorder %s15, 3
      %p114 = pnand %p112, %p113
      %p115 = pneg %p114
      // Predicated region
      $region9: #{tpu_custom_call.1} parent=5 // pred_check
        _
      $region10: #{tpu_custom_call.1} parent=5 // pred_check_branch
        %117 = sbr.rel (%p114) target = $region12
      $region11: #{tpu_custom_call.1} parent=5 // pred_region
        %s118 = ssub.s32 %s15, 1
        // Predicated region
        $region13: #{tpu_custom_call.1} parent=11 // pred_check
          %p119 = pneg %p76
        $region14: #{tpu_custom_call.1} parent=11 // pred_check_branch
          %121 = sbr.rel (%p119) target = $region16
        $region15: #{tpu_custom_call.1} parent=11 // pred_region
          %s123 = ssub.s32 3072, 3072
          %124 = vsyncadd [#allocation6], %s123
          %s125 = sshll.u32 [#allocation5], 4
          %s126 = int_to_ptr.vmem [resolvable:$true] %s125
          %131 = dma.hbm_to_vmem [thread:$0]  %s1, 3072, %s126, [#allocation6], 192, 192, 12
        $region16: #{tpu_custom_call.1} parent=11 // pred_fallthru
          _
      $region12: #{tpu_custom_call.1} parent=5 // pred_fallthru
        _
      %p132 = scmp.lt.s32.totalorder %s15, 2
      // Predicated region
      $region17: #{tpu_custom_call.1} parent=5 // pred_check
        %p133 = pneg %p132
      $region18: #{tpu_custom_call.1} parent=5 // pred_check_branch
        %135 = sbr.rel (%p133) target = $region20
      $region19: #{tpu_custom_call.1} parent=5 // pred_region
        // Predicated region
        $region21: #{tpu_custom_call.1} parent=19 // pred_check
          %p136 = pneg %p49
        $region22: #{tpu_custom_call.1} parent=19 // pred_check_branch
          %138 = sbr.rel (%p136) target = $region24
        $region23: #{tpu_custom_call.1} parent=19 // pred_region
          %s139 = sand.u32 %s39, 1
          %s140 = scalar_lea.sflag [#allocation3], %s139
          %s141 = sand.u32 %s39, 1
          %s142 = smul.addr %s141, 256
          %s143 = scalar_lea.vmem [#allocation2], %s142
          %s144 = smul.u32 64, %s23
          %s146 = ssub.s32 4096, 4096
          %147 = vsyncadd %s140, %s146
          %s148 = smul.addr %s22, 64
          %s149 = sadd.s32 %s144, %s148
          %s150 = smul.addr %s149, 64
          %s151 = scalar_lea.hbm %s0, %s150
          %s152 = sshll.u32 %s143, 4
          %s153 = int_to_ptr.vmem [resolvable:$true] %s152
          %158 = dma.hbm_to_vmem [thread:$0]  %s151, 4096, %s153, %s140, 64, 64, 4
        $region24: #{tpu_custom_call.1} parent=19 // pred_fallthru
          _
      $region20: #{tpu_custom_call.1} parent=5 // pred_fallthru
        _
      %p159 = scmp.le.s32.totalorder 1, %s15
      %p160 = scmp.lt.s32.totalorder %s15, 3
      %p161 = pnand %p159, %p160
      %p162 = pneg %p161
      // Predicated region
      $region25: #{tpu_custom_call.1} parent=5 // pred_check
        _
      $region26: #{tpu_custom_call.1} parent=5 // pred_check_branch
        %164 = sbr.rel (%p161) target = $region28
      $region27: #{tpu_custom_call.1} parent=5 // pred_region
        %s165 = ssub.s32 %s15, 1
        %s166 = sand.u32 %s42, 1
        %s167 = scalar_lea.sflag [#allocation3], %s166
        %s168 = sand.u32 %s42, 1
        %s169 = smul.addr %s168, 256
        %s170 = scalar_lea.vmem [#allocation2], %s169
        // Predicated region
        $region29: #{tpu_custom_call.1} parent=27 // pred_check
          %p171 = pneg %p55
        $region30: #{tpu_custom_call.1} parent=27 // pred_check_branch
          %173 = sbr.rel (%p171) target = $region32
        $region31: #{tpu_custom_call.1} parent=27 // pred_region
          %174 = dma.done %s167, 4096
        $region32: #{tpu_custom_call.1} parent=27 // pred_fallthru
          _
        // Predicated region
        $region33: #{tpu_custom_call.1} parent=27 // pred_check
          %p175 = pneg %p76
        $region34: #{tpu_custom_call.1} parent=27 // pred_check_branch
          %177 = sbr.rel (%p175) target = $region36
        $region35: #{tpu_custom_call.1} parent=27 // pred_region
          %178 = dma.done [#allocation6], 3072
        $region36: #{tpu_custom_call.1} parent=27 // pred_fallthru
          _
        %s179 = sand.u32 %s42, 1
        %s180 = scalar_lea.sflag [#allocation3], %s179
        %s181 = sand.u32 %s42, 1
        %s182 = smul.addr %s181, 256
        %s183 = scalar_lea.vmem [#allocation2], %s182
        %p184 = pneg %p55
        %p185 = pneg %p52
        %p186 = pneg %p76
        %p187 = pneg %p73
        %p188 = pneg %p104
        %p189 = pneg %p101
        %s190 = sand.u32 %s91, 1
        %s191 = scalar_lea.sflag [#allocation4], %s190
        %s192 = sand.u32 %s91, 1
        %s193 = smul.addr %s192, 768
        %s194 = scalar_lea.vmem [#allocation7], %s193
        %s195 = smul.u32 64, %s25
        %s196 = smul.u32 64, %s25
        %v198 = vld [vmem:[%s170] sm:$0xf]
        %v199 = vld [vmem:[%s170 + $0x4] sm:$0xf]
        %v200 = vld [vmem:[%s170 + $0x8] sm:$0xf]
        %v201 = vld [vmem:[%s170 + $0xc] sm:$0xf]
        %v202 = vld [vmem:[%s170 + $0x10] sm:$0xf]
        %v203 = vld [vmem:[%s170 + $0x14] sm:$0xf]
        %v204 = vld [vmem:[%s170 + $0x18] sm:$0xf]
        %v205 = vld [vmem:[%s170 + $0x1c] sm:$0xf]
        %v206 = vld [vmem:[%s170 + $0x20] sm:$0xf]
        %v207 = vld [vmem:[%s170 + $0x24] sm:$0xf]
        %v208 = vld [vmem:[%s170 + $0x28] sm:$0xf]
        %v209 = vld [vmem:[%s170 + $0x2c] sm:$0xf]
        %v210 = vld [vmem:[%s170 + $0x30] sm:$0xf]
        %v211 = vld [vmem:[%s170 + $0x34] sm:$0xf]
        %v212 = vld [vmem:[%s170 + $0x38] sm:$0xf]
        %v213 = vld [vmem:[%s170 + $0x3c] sm:$0xf]
        %v214 = vld [vmem:[%s170 + $0x40] sm:$0xf]
        %v215 = vld [vmem:[%s170 + $0x44] sm:$0xf]
        %v216 = vld [vmem:[%s170 + $0x48] sm:$0xf]
        %v217 = vld [vmem:[%s170 + $0x4c] sm:$0xf]
        %v218 = vld [vmem:[%s170 + $0x50] sm:$0xf]
        %v219 = vld [vmem:[%s170 + $0x54] sm:$0xf]
        %v220 = vld [vmem:[%s170 + $0x58] sm:$0xf]
        %v221 = vld [vmem:[%s170 + $0x5c] sm:$0xf]
        %v222 = vld [vmem:[%s170 + $0x60] sm:$0xf]
        %v223 = vld [vmem:[%s170 + $0x64] sm:$0xf]
        %v224 = vld [vmem:[%s170 + $0x68] sm:$0xf]
        %v225 = vld [vmem:[%s170 + $0x6c] sm:$0xf]
        %v226 = vld [vmem:[%s170 + $0x70] sm:$0xf]
        %v227 = vld [vmem:[%s170 + $0x74] sm:$0xf]
        %v228 = vld [vmem:[%s170 + $0x78] sm:$0xf]
        %v229 = vld [vmem:[%s170 + $0x7c] sm:$0xf]
        %v230 = vld [vmem:[%s170 + $0x80] sm:$0xf]
        %v231 = vld [vmem:[%s170 + $0x84] sm:$0xf]
        %v232 = vld [vmem:[%s170 + $0x88] sm:$0xf]
        %v233 = vld [vmem:[%s170 + $0x8c] sm:$0xf]
        %v234 = vld [vmem:[%s170 + $0x90] sm:$0xf]
        %v235 = vld [vmem:[%s170 + $0x94] sm:$0xf]
        %v236 = vld [vmem:[%s170 + $0x98] sm:$0xf]
        %v237 = vld [vmem:[%s170 + $0x9c] sm:$0xf]
        %v238 = vld [vmem:[%s170 + $0xa0] sm:$0xf]
        %v239 = vld [vmem:[%s170 + $0xa4] sm:$0xf]
        %v240 = vld [vmem:[%s170 + $0xa8] sm:$0xf]
        %v241 = vld [vmem:[%s170 + $0xac] sm:$0xf]
        %v242 = vld [vmem:[%s170 + $0xb0] sm:$0xf]
        %v243 = vld [vmem:[%s170 + $0xb4] sm:$0xf]
        %v244 = vld [vmem:[%s170 + $0xb8] sm:$0xf]
        %v245 = vld [vmem:[%s170 + $0xbc] sm:$0xf]
        %v246 = vld [vmem:[%s170 + $0xc0] sm:$0xf]
        %v247 = vld [vmem:[%s170 + $0xc4] sm:$0xf]
        %v248 = vld [vmem:[%s170 + $0xc8] sm:$0xf]
        %v249 = vld [vmem:[%s170 + $0xcc] sm:$0xf]
        %v250 = vld [vmem:[%s170 + $0xd0] sm:$0xf]
        %v251 = vld [vmem:[%s170 + $0xd4] sm:$0xf]
        %v252 = vld [vmem:[%s170 + $0xd8] sm:$0xf]
        %v253 = vld [vmem:[%s170 + $0xdc] sm:$0xf]
        %v254 = vld [vmem:[%s170 + $0xe0] sm:$0xf]
        %v255 = vld [vmem:[%s170 + $0xe4] sm:$0xf]
        %v256 = vld [vmem:[%s170 + $0xe8] sm:$0xf]
        %v257 = vld [vmem:[%s170 + $0xec] sm:$0xf]
        %v258 = vld [vmem:[%s170 + $0xf0] sm:$0xf]
        %v259 = vld [vmem:[%s170 + $0xf4] sm:$0xf]
        %v260 = vld [vmem:[%s170 + $0xf8] sm:$0xf]
        %v261 = vld [vmem:[%s170 + $0xfc] sm:$0xf]
        %v262 = vld [vmem:[#allocation5] sm:$0xff]
        %v263 = vld [vmem:[#allocation5 + $0x8] sm:$0xf]
        %v264 = vld [vmem:[#allocation5 + $0xc] sm:$0xff]
        %v265 = vld [vmem:[#allocation5 + $0x14] sm:$0xf]
        %v266 = vld [vmem:[#allocation5 + $0x18] sm:$0xff]
        %v267 = vld [vmem:[#allocation5 + $0x20] sm:$0xf]
        %v268 = vld [vmem:[#allocation5 + $0x24] sm:$0xff]
        %v269 = vld [vmem:[#allocation5 + $0x2c] sm:$0xf]
        %v270 = vld [vmem:[#allocation5 + $0x30] sm:$0xff]
        %v271 = vld [vmem:[#allocation5 + $0x38] sm:$0xf]
        %v272 = vld [vmem:[#allocation5 + $0x3c] sm:$0xff]
        %v273 = vld [vmem:[#allocation5 + $0x44] sm:$0xf]
        %v274 = vld [vmem:[#allocation5 + $0x48] sm:$0xff]
        %v275 = vld [vmem:[#allocation5 + $0x50] sm:$0xf]
        %v276 = vld [vmem:[#allocation5 + $0x54] sm:$0xff]
        %v277 = vld [vmem:[#allocation5 + $0x5c] sm:$0xf]
        %v278 = vld [vmem:[#allocation5 + $0x60] sm:$0xff]
        %v279 = vld [vmem:[#allocation5 + $0x68] sm:$0xf]
        %v280 = vld [vmem:[#allocation5 + $0x6c] sm:$0xff]
        %v281 = vld [vmem:[#allocation5 + $0x74] sm:$0xf]
        %v282 = vld [vmem:[#allocation5 + $0x78] sm:$0xff]
        %v283 = vld [vmem:[#allocation5 + $0x80] sm:$0xf]
        %v284 = vld [vmem:[#allocation5 + $0x84] sm:$0xff]
        %v285 = vld [vmem:[#allocation5 + $0x8c] sm:$0xf]
        %v286 = vld [vmem:[#allocation5 + $0x90] sm:$0xff]
        %v287 = vld [vmem:[#allocation5 + $0x98] sm:$0xf]
        %v288 = vld [vmem:[#allocation5 + $0x9c] sm:$0xff]
        %v289 = vld [vmem:[#allocation5 + $0xa4] sm:$0xf]
        %v290 = vld [vmem:[#allocation5 + $0xa8] sm:$0xff]
        %v291 = vld [vmem:[#allocation5 + $0xb0] sm:$0xf]
        %v292 = vld [vmem:[#allocation5 + $0xb4] sm:$0xff]
        %v293 = vld [vmem:[#allocation5 + $0xbc] sm:$0xf]
        %v358 = vunpack.c.l.b16 %v198
        %v359 = vunpack.c.l.b16 %v199
        %v360 = vunpack.c.l.b16 %v200
        %v361 = vunpack.c.l.b16 %v201
        %v362 = vunpack.c.l.b16 %v202
        %v363 = vunpack.c.l.b16 %v203
        %v364 = vunpack.c.l.b16 %v204
        %v365 = vunpack.c.l.b16 %v205
        %v366 = vunpack.c.l.b16 %v206
        %v367 = vunpack.c.l.b16 %v207
        %v368 = vunpack.c.l.b16 %v208
        %v369 = vunpack.c.l.b16 %v209
        %v370 = vunpack.c.l.b16 %v210
        %v371 = vunpack.c.l.b16 %v211
        %v372 = vunpack.c.l.b16 %v212
        %v373 = vunpack.c.l.b16 %v213
        %v374 = vunpack.c.l.b16 %v214
        %v375 = vunpack.c.l.b16 %v215
        %v376 = vunpack.c.l.b16 %v216
        %v377 = vunpack.c.l.b16 %v217
        %v378 = vunpack.c.l.b16 %v218
        %v379 = vunpack.c.l.b16 %v219
        %v380 = vunpack.c.l.b16 %v220
        %v381 = vunpack.c.l.b16 %v221
        %v382 = vunpack.c.l.b16 %v222
        %v383 = vunpack.c.l.b16 %v223
        %v384 = vunpack.c.l.b16 %v224
        %v385 = vunpack.c.l.b16 %v225
        %v386 = vunpack.c.l.b16 %v226
        %v387 = vunpack.c.l.b16 %v227
        %v388 = vunpack.c.l.b16 %v228
        %v389 = vunpack.c.l.b16 %v229
        %v390 = vunpack.c.l.b16 %v230
        %v391 = vunpack.c.l.b16 %v231
        %v392 = vunpack.c.l.b16 %v232
        %v393 = vunpack.c.l.b16 %v233
        %v394 = vunpack.c.l.b16 %v234
        %v395 = vunpack.c.l.b16 %v235
        %v396 = vunpack.c.l.b16 %v236
        %v397 = vunpack.c.l.b16 %v237
        %v398 = vunpack.c.l.b16 %v238
        %v399 = vunpack.c.l.b16 %v239
        %v400 = vunpack.c.l.b16 %v240
        %v401 = vunpack.c.l.b16 %v241
        %v402 = vunpack.c.l.b16 %v242
        %v403 = vunpack.c.l.b16 %v243
        %v404 = vunpack.c.l.b16 %v244
        %v405 = vunpack.c.l.b16 %v245
        %v406 = vunpack.c.l.b16 %v246
        %v407 = vunpack.c.l.b16 %v247
        %v408 = vunpack.c.l.b16 %v248
        %v409 = vunpack.c.l.b16 %v249
        %v410 = vunpack.c.l.b16 %v250
        %v411 = vunpack.c.l.b16 %v251
        %v412 = vunpack.c.l.b16 %v252
        %v413 = vunpack.c.l.b16 %v253
        %v414 = vunpack.c.l.b16 %v254
        %v415 = vunpack.c.l.b16 %v255
        %v416 = vunpack.c.l.b16 %v256
        %v417 = vunpack.c.l.b16 %v257
        %v418 = vunpack.c.l.b16 %v258
        %v419 = vunpack.c.l.b16 %v259
        %v420 = vunpack.c.l.b16 %v260
        %v421 = vunpack.c.l.b16 %v261
        %v422 = vpack.c.b16 %v359, %v358
        %v423 = vpack.c.b16 %v361, %v360
        %v424 = vpack.c.b16 %v363, %v362
        %v425 = vpack.c.b16 %v365, %v364
        %v426 = vpack.c.b16 %v367, %v366
        %v427 = vpack.c.b16 %v369, %v368
        %v428 = vpack.c.b16 %v371, %v370
        %v429 = vpack.c.b16 %v373, %v372
        %v430 = vpack.c.b16 %v375, %v374
        %v431 = vpack.c.b16 %v377, %v376
        %v432 = vpack.c.b16 %v379, %v378
        %v433 = vpack.c.b16 %v381, %v380
        %v434 = vpack.c.b16 %v383, %v382
        %v435 = vpack.c.b16 %v385, %v384
        %v436 = vpack.c.b16 %v387, %v386
        %v437 = vpack.c.b16 %v389, %v388
        %v438 = vpack.c.b16 %v391, %v390
        %v439 = vpack.c.b16 %v393, %v392
        %v440 = vpack.c.b16 %v395, %v394
        %v441 = vpack.c.b16 %v397, %v396
        %v442 = vpack.c.b16 %v399, %v398
        %v443 = vpack.c.b16 %v401, %v400
        %v444 = vpack.c.b16 %v403, %v402
        %v445 = vpack.c.b16 %v405, %v404
        %v446 = vpack.c.b16 %v407, %v406
        %v447 = vpack.c.b16 %v409, %v408
        %v448 = vpack.c.b16 %v411, %v410
        %v449 = vpack.c.b16 %v413, %v412
        %v450 = vpack.c.b16 %v415, %v414
        %v451 = vpack.c.b16 %v417, %v416
        %v452 = vpack.c.b16 %v419, %v418
        %v453 = vpack.c.b16 %v421, %v420
        %v518 = vunpack.c.l.b16 %v262
        %v519 = vunpack.c.h.b16 %v262
        %v520 = vunpack.c.l.b16 %v263
        %v521 = vunpack.c.l.b16 %v264
        %v522 = vunpack.c.h.b16 %v264
        %v523 = vunpack.c.l.b16 %v265
        %v524 = vunpack.c.l.b16 %v266
        %v525 = vunpack.c.h.b16 %v266
        %v526 = vunpack.c.l.b16 %v267
        %v527 = vunpack.c.l.b16 %v268
        %v528 = vunpack.c.h.b16 %v268
        %v529 = vunpack.c.l.b16 %v269
        %v530 = vunpack.c.l.b16 %v270
        %v531 = vunpack.c.h.b16 %v270
        %v532 = vunpack.c.l.b16 %v271
        %v533 = vunpack.c.l.b16 %v272
        %v534 = vunpack.c.h.b16 %v272
        %v535 = vunpack.c.l.b16 %v273
        %v536 = vunpack.c.l.b16 %v274
        %v537 = vunpack.c.h.b16 %v274
        %v538 = vunpack.c.l.b16 %v275
        %v539 = vunpack.c.l.b16 %v276
        %v540 = vunpack.c.h.b16 %v276
        %v541 = vunpack.c.l.b16 %v277
        %v542 = vunpack.c.l.b16 %v278
        %v543 = vunpack.c.h.b16 %v278
        %v544 = vunpack.c.l.b16 %v279
        %v545 = vunpack.c.l.b16 %v280
        %v546 = vunpack.c.h.b16 %v280
        %v547 = vunpack.c.l.b16 %v281
        %v548 = vunpack.c.l.b16 %v282
        %v549 = vunpack.c.h.b16 %v282
        %v550 = vunpack.c.l.b16 %v283
        %v551 = vunpack.c.l.b16 %v284
        %v552 = vunpack.c.h.b16 %v284
        %v553 = vunpack.c.l.b16 %v285
        %v554 = vunpack.c.l.b16 %v286
        %v555 = vunpack.c.h.b16 %v286
        %v556 = vunpack.c.l.b16 %v287
        %v557 = vunpack.c.l.b16 %v288
        %v558 = vunpack.c.h.b16 %v288
        %v559 = vunpack.c.l.b16 %v289
        %v560 = vunpack.c.l.b16 %v290
        %v561 = vunpack.c.h.b16 %v290
        %v562 = vunpack.c.l.b16 %v291
        %v563 = vunpack.c.l.b16 %v292
        %v564 = vunpack.c.h.b16 %v292
        %v565 = vunpack.c.l.b16 %v293
        %v566 = vpack.c.b16 %v521, %v518
        %v567 = vpack.c.b16 %v522, %v519
        %v568 = vpack.c.b16 %v523, %v520
        %v569 = vpack.c.b16 %v527, %v524
        %v570 = vpack.c.b16 %v528, %v525
        %v571 = vpack.c.b16 %v529, %v526
        %v572 = vpack.c.b16 %v533, %v530
        %v573 = vpack.c.b16 %v534, %v531
        %v574 = vpack.c.b16 %v535, %v532
        %v575 = vpack.c.b16 %v539, %v536
        %v576 = vpack.c.b16 %v540, %v537
        %v577 = vpack.c.b16 %v541, %v538
        %v578 = vpack.c.b16 %v545, %v542
        %v579 = vpack.c.b16 %v546, %v543
        %v580 = vpack.c.b16 %v547, %v544
        %v581 = vpack.c.b16 %v551, %v548
        %v582 = vpack.c.b16 %v552, %v549
        %v583 = vpack.c.b16 %v553, %v550
        %v584 = vpack.c.b16 %v557, %v554
        %v585 = vpack.c.b16 %v558, %v555
        %v586 = vpack.c.b16 %v559, %v556
        %v587 = vpack.c.b16 %v563, %v560
        %v588 = vpack.c.b16 %v564, %v561
        %v589 = vpack.c.b16 %v565, %v562
        %614 = vmatprep.subr.bf16.mxu0 %v567
        %615 = vmatpush1.bf16.msra.mxu0 %v566
        %616 = vmatprep.subr.bf16.mxu0 %v570
        %617 = vmatpush1.bf16.msra.mxu0 %v569
        %618 = vmatprep.subr.bf16.mxu0 %v573
        %619 = vmatpush1.bf16.msra.mxu0 %v572
        %620 = vmatprep.subr.bf16.mxu0 %v576
        %621 = vmatpush1.bf16.msra.mxu0 %v575
        %622 = vmatprep.subr.bf16.mxu0 %v579
        %623 = vmatpush1.bf16.msra.mxu0 %v578
        %624 = vmatprep.subr.bf16.mxu0 %v582
        %625 = vmatpush1.bf16.msra.mxu0 %v581
        %626 = vmatprep.subr.bf16.mxu0 %v585
        %627 = vmatpush1.bf16.msra.mxu0 %v584
        %628 = vmatprep.subr.bf16.mxu0 %v588
        %629 = vmatpush1.bf16.msra.mxu0 %v587
        %630 = vmatprep.subr.bf16.mxu0 0
        %631 = vmatpush1.bf16.msra.mxu0 0
        %632 = vmatprep.subr.bf16.mxu0 0
        %633 = vmatpush1.bf16.msra.mxu0 0
        %634 = vmatprep.subr.bf16.mxu0 0
        %635 = vmatpush1.bf16.msra.mxu0 0
        %636 = vmatprep.subr.bf16.mxu0 0
        %637 = vmatpush1.bf16.msra.mxu0 0
        %638 = vmatprep.subr.bf16.mxu0 0
        %639 = vmatpush1.bf16.msra.mxu0 0
        %640 = vmatprep.subr.bf16.mxu0 0
        %641 = vmatpush1.bf16.msra.mxu0 0
        %642 = vmatprep.subr.bf16.mxu0 0
        %643 = vmatpush1.bf16.msra.mxu0 0
        %644 = vmatprep.subr.bf16.mxu0 0
        %645 = vmatpush1.bf16.msra.mxu0 0
        %646 = vmatprep.mubr.bf16.mxu0 0
        %647 = vmatmul.mubr.bf16.gmra.mrb[0].mxu0 %v422
        %v648 = vpop.f32.mrb[0].mxu0
        %v649 = vadd.f32 0.0, %v648
        %v650 = vpop.f32.mrb[0].mxu0
        %v651 = vadd.f32 0.0, %v650
        %v652 = vpop.f32.mrb[0].mxu0
        %v653 = vadd.f32 0.0, %v652
        %v654 = vpop.f32.mrb[0].mxu0
        %v655 = vadd.f32 0.0, %v654
        %656 = vmatprep.mubr.bf16.mxu0 0
        %657 = vmatmul.mubr.bf16.gmra.mrb[0].mxu0 %v423
        %v658 = vpop.f32.mrb[0].mxu0
        %v659 = vadd.f32 0.0, %v658
        %v660 = vpop.f32.mrb[0].mxu0
        %v661 = vadd.f32 0.0, %v660
        %v662 = vpop.f32.mrb[0].mxu0
        %v663 = vadd.f32 0.0, %v662
        %v664 = vpop.f32.mrb[0].mxu0
        %v665 = vadd.f32 0.0, %v664
        %666 = vmatprep.mubr.bf16.mxu0 0
        %667 = vmatmul.mubr.bf16.gmra.mrb[0].mxu0 %v424
        %v668 = vpop.f32.mrb[0].mxu0
        %v669 = vadd.f32 0.0, %v668
        %v670 = vpop.f32.mrb[0].mxu0
        %v671 = vadd.f32 0.0, %v670
        %v672 = vpop.f32.mrb[0].mxu0
        %v673 = vadd.f32 0.0, %v672
        %v674 = vpop.f32.mrb[0].mxu0
        %v675 = vadd.f32 0.0, %v674
        %676 = vmatprep.mubr.bf16.mxu0 0
        %677 = vmatmul.mubr.bf16.gmra.mrb[0].mxu0 %v425
        %v678 = vpop.f32.mrb[0].mxu0
        %v679 = vadd.f32 0.0, %v678
        %v680 = vpop.f32.mrb[0].mxu0
        %v681 = vadd.f32 0.0, %v680
        %v682 = vpop.f32.mrb[0].mxu0
        %v683 = vadd.f32 0.0, %v682
        %v684 = vpop.f32.mrb[0].mxu0
        %v685 = vadd.f32 0.0, %v684
        %686 = vmatprep.mubr.bf16.mxu0 0
        %687 = vmatmul.mubr.bf16.gmra.mrb[0].mxu0 %v426
        %v688 = vpop.f32.mrb[0].mxu0
        %v689 = vadd.f32 0.0, %v688
        %v690 = vpop.f32.mrb[0].mxu0
        %v691 = vadd.f32 0.0, %v690
        %v692 = vpop.f32.mrb[0].mxu0
        %v693 = vadd.f32 0.0, %v692
        %v694 = vpop.f32.mrb[0].mxu0
        %v695 = vadd.f32 0.0, %v694
        %696 = vmatprep.mubr.bf16.mxu0 0
        %697 = vmatmul.mubr.bf16.gmra.mrb[0].mxu0 %v427
        %v698 = vpop.f32.mrb[0].mxu0
        %v699 = vadd.f32 0.0, %v698
        %v700 = vpop.f32.mrb[0].mxu0
        %v701 = vadd.f32 0.0, %v700
        %v702 = vpop.f32.mrb[0].mxu0
        %v703 = vadd.f32 0.0, %v702
        %v704 = vpop.f32.mrb[0].mxu0
        %v705 = vadd.f32 0.0, %v704
        %706 = vmatprep.mubr.bf16.mxu0 0
        %707 = vmatmul.mubr.bf16.gmra.mrb[0].mxu0 %v428
        %v708 = vpop.f32.mrb[0].mxu0
        %v709 = vadd.f32 0.0, %v708
        %v710 = vpop.f32.mrb[0].mxu0
        %v711 = vadd.f32 0.0, %v710
        %v712 = vpop.f32.mrb[0].mxu0
        %v713 = vadd.f32 0.0, %v712
        %v714 = vpop.f32.mrb[0].mxu0
        %v715 = vadd.f32 0.0, %v714
        %716 = vmatprep.mubr.bf16.mxu0 0
        %717 = vmatmul.mubr.bf16.gmra.mrb[0].mxu0 %v429
        %v718 = vpop.f32.mrb[0].mxu0
        %v719 = vadd.f32 0.0, %v718
        %v720 = vpop.f32.mrb[0].mxu0
        %v721 = vadd.f32 0.0, %v720
        %v722 = vpop.f32.mrb[0].mxu0
        %v723 = vadd.f32 0.0, %v722
        %v724 = vpop.f32.mrb[0].mxu0
        %v725 = vadd.f32 0.0, %v724
        %726 = vmatprep.mubr.bf16.mxu0 0
        %727 = vmatmul.mubr.bf16.gmra.mrb[0].mxu0 %v430
        %v728 = vpop.f32.mrb[0].mxu0
        %v729 = vadd.f32 0.0, %v728
        %v730 = vpop.f32.mrb[0].mxu0
        %v731 = vadd.f32 0.0, %v730
        %v732 = vpop.f32.mrb[0].mxu0
        %v733 = vadd.f32 0.0, %v732
        %v734 = vpop.f32.mrb[0].mxu0
        %v735 = vadd.f32 0.0, %v734
        %736 = vmatprep.mubr.bf16.mxu0 0
        %737 = vmatmul.mubr.bf16.gmra.mrb[0].mxu0 %v431
        %v738 = vpop.f32.mrb[0].mxu0
        %v739 = vadd.f32 0.0, %v738
        %v740 = vpop.f32.mrb[0].mxu0
        %v741 = vadd.f32 0.0, %v740
        %v742 = vpop.f32.mrb[0].mxu0
        %v743 = vadd.f32 0.0, %v742
        %v744 = vpop.f32.mrb[0].mxu0
        %v745 = vadd.f32 0.0, %v744
        %746 = vmatprep.mubr.bf16.mxu0 0
        %747 = vmatmul.mubr.bf16.gmra.mrb[0].mxu0 %v432
        %v748 = vpop.f32.mrb[0].mxu0
        %v749 = vadd.f32 0.0, %v748
        %v750 = vpop.f32.mrb[0].mxu0
        %v751 = vadd.f32 0.0, %v750
        %v752 = vpop.f32.mrb[0].mxu0
        %v753 = vadd.f32 0.0, %v752
        %v754 = vpop.f32.mrb[0].mxu0
        %v755 = vadd.f32 0.0, %v754
        %756 = vmatprep.mubr.bf16.mxu0 0
        %757 = vmatmul.mubr.bf16.gmra.mrb[0].mxu0 %v433
        %v758 = vpop.f32.mrb[0].mxu0
        %v759 = vadd.f32 0.0, %v758
        %v760 = vpop.f32.mrb[0].mxu0
        %v761 = vadd.f32 0.0, %v760
        %v762 = vpop.f32.mrb[0].mxu0
        %v763 = vadd.f32 0.0, %v762
        %v764 = vpop.f32.mrb[0].mxu0
        %v765 = vadd.f32 0.0, %v764
        %766 = vmatprep.mubr.bf16.mxu0 0
        %767 = vmatmul.mubr.bf16.gmra.mrb[0].mxu0 %v434
        %v768 = vpop.f32.mrb[0].mxu0
        %v769 = vadd.f32 0.0, %v768
        %v770 = vpop.f32.mrb[0].mxu0
        %v771 = vadd.f32 0.0, %v770
        %v772 = vpop.f32.mrb[0].mxu0
        %v773 = vadd.f32 0.0, %v772
        %v774 = vpop.f32.mrb[0].mxu0
        %v775 = vadd.f32 0.0, %v774
        %776 = vmatprep.mubr.bf16.mxu0 0
        %777 = vmatmul.mubr.bf16.gmra.mrb[0].mxu0 %v435
        %v778 = vpop.f32.mrb[0].mxu0
        %v779 = vadd.f32 0.0, %v778
        %v780 = vpop.f32.mrb[0].mxu0
        %v781 = vadd.f32 0.0, %v780
        %v782 = vpop.f32.mrb[0].mxu0
        %v783 = vadd.f32 0.0, %v782
        %v784 = vpop.f32.mrb[0].mxu0
        %v785 = vadd.f32 0.0, %v784
        %786 = vmatprep.mubr.bf16.mxu0 0
        %787 = vmatmul.mubr.bf16.gmra.mrb[0].mxu0 %v436
        %v788 = vpop.f32.mrb[0].mxu0
        %v789 = vadd.f32 0.0, %v788
        %v790 = vpop.f32.mrb[0].mxu0
        %v791 = vadd.f32 0.0, %v790
        %v792 = vpop.f32.mrb[0].mxu0
        %v793 = vadd.f32 0.0, %v792
        %v794 = vpop.f32.mrb[0].mxu0
        %v795 = vadd.f32 0.0, %v794
        %796 = vmatprep.mubr.bf16.mxu0 0
        %797 = vmatmul.mubr.bf16.gmra.mrb[0].mxu0 %v437
        %v798 = vpop.f32.mrb[0].mxu0
        %v799 = vadd.f32 0.0, %v798
        %v800 = vpop.f32.mrb[0].mxu0
        %v801 = vadd.f32 0.0, %v800
        %v802 = vpop.f32.mrb[0].mxu0
        %v803 = vadd.f32 0.0, %v802
        %v804 = vpop.f32.mrb[0].mxu0
        %v805 = vadd.f32 0.0, %v804
        %806 = vmatprep.mubr.bf16.mxu0 0
        %807 = vmatmul.mubr.bf16.gmra.mrb[0].mxu0 %v438
        %v808 = vpop.f32.mrb[0].mxu0
        %v809 = vadd.f32 0.0, %v808
        %v810 = vpop.f32.mrb[0].mxu0
        %v811 = vadd.f32 0.0, %v810
        %v812 = vpop.f32.mrb[0].mxu0
        %v813 = vadd.f32 0.0, %v812
        %v814 = vpop.f32.mrb[0].mxu0
        %v815 = vadd.f32 0.0, %v814
        %816 = vmatprep.mubr.bf16.mxu0 0
        %817 = vmatmul.mubr.bf16.gmra.mrb[0].mxu0 %v439
        %v818 = vpop.f32.mrb[0].mxu0
        %v819 = vadd.f32 0.0, %v818
        %v820 = vpop.f32.mrb[0].mxu0
        %v821 = vadd.f32 0.0, %v820
        %v822 = vpop.f32.mrb[0].mxu0
        %v823 = vadd.f32 0.0, %v822
        %v824 = vpop.f32.mrb[0].mxu0
        %v825 = vadd.f32 0.0, %v824
        %826 = vmatprep.mubr.bf16.mxu0 0
        %827 = vmatmul.mubr.bf16.gmra.mrb[0].mxu0 %v440
        %v828 = vpop.f32.mrb[0].mxu0
        %v829 = vadd.f32 0.0, %v828
        %v830 = vpop.f32.mrb[0].mxu0
        %v831 = vadd.f32 0.0, %v830
        %v832 = vpop.f32.mrb[0].mxu0
        %v833 = vadd.f32 0.0, %v832
        %v834 = vpop.f32.mrb[0].mxu0
        %v835 = vadd.f32 0.0, %v834
        %836 = vmatprep.mubr.bf16.mxu0 0
        %837 = vmatmul.mubr.bf16.gmra.mrb[0].mxu0 %v441
        %v838 = vpop.f32.mrb[0].mxu0
        %v839 = vadd.f32 0.0, %v838
        %v840 = vpop.f32.mrb[0].mxu0
        %v841 = vadd.f32 0.0, %v840
        %v842 = vpop.f32.mrb[0].mxu0
        %v843 = vadd.f32 0.0, %v842
        %v844 = vpop.f32.mrb[0].mxu0
        %v845 = vadd.f32 0.0, %v844
        %846 = vmatprep.mubr.bf16.mxu0 0
        %847 = vmatmul.mubr.bf16.gmra.mrb[0].mxu0 %v442
        %v848 = vpop.f32.mrb[0].mxu0
        %v849 = vadd.f32 0.0, %v848
        %v850 = vpop.f32.mrb[0].mxu0
        %v851 = vadd.f32 0.0, %v850
        %v852 = vpop.f32.mrb[0].mxu0
        %v853 = vadd.f32 0.0, %v852
        %v854 = vpop.f32.mrb[0].mxu0
        %v855 = vadd.f32 0.0, %v854
        %856 = vmatprep.mubr.bf16.mxu0 0
        %857 = vmatmul.mubr.bf16.gmra.mrb[0].mxu0 %v443
        %v858 = vpop.f32.mrb[0].mxu0
        %v859 = vadd.f32 0.0, %v858
        %v860 = vpop.f32.mrb[0].mxu0
        %v861 = vadd.f32 0.0, %v860
        %v862 = vpop.f32.mrb[0].mxu0
        %v863 = vadd.f32 0.0, %v862
        %v864 = vpop.f32.mrb[0].mxu0
        %v865 = vadd.f32 0.0, %v864
        %866 = vmatprep.mubr.bf16.mxu0 0
        %867 = vmatmul.mubr.bf16.gmra.mrb[0].mxu0 %v444
        %v868 = vpop.f32.mrb[0].mxu0
        %v869 = vadd.f32 0.0, %v868
        %v870 = vpop.f32.mrb[0].mxu0
        %v871 = vadd.f32 0.0, %v870
        %v872 = vpop.f32.mrb[0].mxu0
        %v873 = vadd.f32 0.0, %v872
        %v874 = vpop.f32.mrb[0].mxu0
        %v875 = vadd.f32 0.0, %v874
        %876 = vmatprep.mubr.bf16.mxu0 0
        %877 = vmatmul.mubr.bf16.gmra.mrb[0].mxu0 %v445
        %v878 = vpop.f32.mrb[0].mxu0
        %v879 = vadd.f32 0.0, %v878
        %v880 = vpop.f32.mrb[0].mxu0
        %v881 = vadd.f32 0.0, %v880
        %v882 = vpop.f32.mrb[0].mxu0
        %v883 = vadd.f32 0.0, %v882
        %v884 = vpop.f32.mrb[0].mxu0
        %v885 = vadd.f32 0.0, %v884
        %886 = vmatprep.mubr.bf16.mxu0 0
        %887 = vmatmul.mubr.bf16.gmra.mrb[0].mxu0 %v446
        %v888 = vpop.f32.mrb[0].mxu0
        %v889 = vadd.f32 0.0, %v888
        %v890 = vpop.f32.mrb[0].mxu0
        %v891 = vadd.f32 0.0, %v890
        %v892 = vpop.f32.mrb[0].mxu0
        %v893 = vadd.f32 0.0, %v892
        %v894 = vpop.f32.mrb[0].mxu0
        %v895 = vadd.f32 0.0, %v894
        %896 = vmatprep.mubr.bf16.mxu0 0
        %897 = vmatmul.mubr.bf16.gmra.mrb[0].mxu0 %v447
        %v898 = vpop.f32.mrb[0].mxu0
        %v899 = vadd.f32 0.0, %v898
        %v900 = vpop.f32.mrb[0].mxu0
        %v901 = vadd.f32 0.0, %v900
        %v902 = vpop.f32.mrb[0].mxu0
        %v903 = vadd.f32 0.0, %v902
        %v904 = vpop.f32.mrb[0].mxu0
        %v905 = vadd.f32 0.0, %v904
        %906 = vmatprep.mubr.bf16.mxu0 0
        %907 = vmatmul.mubr.bf16.gmra.mrb[0].mxu0 %v448
        %v908 = vpop.f32.mrb[0].mxu0
        %v909 = vadd.f32 0.0, %v908
        %v910 = vpop.f32.mrb[0].mxu0
        %v911 = vadd.f32 0.0, %v910
        %v912 = vpop.f32.mrb[0].mxu0
        %v913 = vadd.f32 0.0, %v912
        %v914 = vpop.f32.mrb[0].mxu0
        %v915 = vadd.f32 0.0, %v914
        %916 = vmatprep.mubr.bf16.mxu0 0
        %917 = vmatmul.mubr.bf16.gmra.mrb[0].mxu0 %v449
        %v918 = vpop.f32.mrb[0].mxu0
        %v919 = vadd.f32 0.0, %v918
        %v920 = vpop.f32.mrb[0].mxu0
        %v921 = vadd.f32 0.0, %v920
        %v922 = vpop.f32.mrb[0].mxu0
        %v923 = vadd.f32 0.0, %v922
        %v924 = vpop.f32.mrb[0].mxu0
        %v925 = vadd.f32 0.0, %v924
        %926 = vmatprep.mubr.bf16.mxu0 0
        %927 = vmatmul.mubr.bf16.gmra.mrb[0].mxu0 %v450
        %v928 = vpop.f32.mrb[0].mxu0
        %v929 = vadd.f32 0.0, %v928
        %v930 = vpop.f32.mrb[0].mxu0
        %v931 = vadd.f32 0.0, %v930
        %v932 = vpop.f32.mrb[0].mxu0
        %v933 = vadd.f32 0.0, %v932
        %v934 = vpop.f32.mrb[0].mxu0
        %v935 = vadd.f32 0.0, %v934
        %936 = vmatprep.mubr.bf16.mxu0 0
        %937 = vmatmul.mubr.bf16.gmra.mrb[0].mxu0 %v451
        %v938 = vpop.f32.mrb[0].mxu0
        %v939 = vadd.f32 0.0, %v938
        %v940 = vpop.f32.mrb[0].mxu0
        %v941 = vadd.f32 0.0, %v940
        %v942 = vpop.f32.mrb[0].mxu0
        %v943 = vadd.f32 0.0, %v942
        %v944 = vpop.f32.mrb[0].mxu0
        %v945 = vadd.f32 0.0, %v944
        %946 = vmatprep.mubr.bf16.mxu0 0
        %947 = vmatmul.mubr.bf16.gmra.mrb[0].mxu0 %v452
        %v948 = vpop.f32.mrb[0].mxu0
        %v949 = vadd.f32 0.0, %v948
        %v950 = vpop.f32.mrb[0].mxu0
        %v951 = vadd.f32 0.0, %v950
        %v952 = vpop.f32.mrb[0].mxu0
        %v953 = vadd.f32 0.0, %v952
        %v954 = vpop.f32.mrb[0].mxu0
        %v955 = vadd.f32 0.0, %v954
        %956 = vmatprep.mubr.bf16.mxu0 0
        %957 = vmatmul.mubr.bf16.gmra.mrb[0].mxu0 %v453
        %v958 = vpop.f32.mrb[0].mxu0
        %v959 = vadd.f32 0.0, %v958
        %v960 = vpop.f32.mrb[0].mxu0
        %v961 = vadd.f32 0.0, %v960
        %v962 = vpop.f32.mrb[0].mxu0
        %v963 = vadd.f32 0.0, %v962
        %v964 = vpop.f32.mrb[0].mxu0
        %v965 = vadd.f32 0.0, %v964
        %966 = vdwg.mxu0
        %967 = vmatprep.subr.bf16.mxu0 0
        %968 = vmatpush1.bf16.msra.mxu0 %v568
        %969 = vmatprep.subr.bf16.mxu0 0
        %970 = vmatpush1.bf16.msra.mxu0 %v571
        %971 = vmatprep.subr.bf16.mxu0 0
        %972 = vmatpush1.bf16.msra.mxu0 %v574
        %973 = vmatprep.subr.bf16.mxu0 0
        %974 = vmatpush1.bf16.msra.mxu0 %v577
        %975 = vmatprep.subr.bf16.mxu0 0
        %976 = vmatpush1.bf16.msra.mxu0 %v580
        %977 = vmatprep.subr.bf16.mxu0 0
        %978 = vmatpush1.bf16.msra.mxu0 %v583
        %979 = vmatprep.subr.bf16.mxu0 0
        %980 = vmatpush1.bf16.msra.mxu0 %v586
        %981 = vmatprep.subr.bf16.mxu0 0
        %982 = vmatpush1.bf16.msra.mxu0 %v589
        %983 = vmatprep.subr.bf16.mxu0 0
        %984 = vmatpush1.bf16.msra.mxu0 0
        %985 = vmatprep.subr.bf16.mxu0 0
        %986 = vmatpush1.bf16.msra.mxu0 0
        %987 = vmatprep.subr.bf16.mxu0 0
        %988 = vmatpush1.bf16.msra.mxu0 0
        %989 = vmatprep.subr.bf16.mxu0 0
        %990 = vmatpush1.bf16.msra.mxu0 0
        %991 = vmatprep.subr.bf16.mxu0 0
        %992 = vmatpush1.bf16.msra.mxu0 0
        %993 = vmatprep.subr.bf16.mxu0 0
        %994 = vmatpush1.bf16.msra.mxu0 0
        %995 = vmatprep.subr.bf16.mxu0 0
        %996 = vmatpush1.bf16.msra.mxu0 0
        %997 = vmatprep.subr.bf16.mxu0 0
        %998 = vmatpush1.bf16.msra.mxu0 0
        %999 = vmatprep.mubr.bf16.mxu0 0
        %1000 = vmatmul.mubr.bf16.gmra.mrb[0].mxu0 %v422
        %v1001 = vpop.f32.mrb[0].mxu0
        %v1002 = vadd.f32 0.0, %v1001
        %v1003 = vpop.f32.mrb[0].mxu0
        %v1004 = vpop.f32.mrb[0].mxu0
        %v1005 = vadd.f32 0.0, %v1004
        %v1006 = vpop.f32.mrb[0].mxu0
        %1007 = vmatprep.mubr.bf16.mxu0 0
        %1008 = vmatmul.mubr.bf16.gmra.mrb[0].mxu0 %v423
        %v1009 = vpop.f32.mrb[0].mxu0
        %v1010 = vadd.f32 0.0, %v1009
        %v1011 = vpop.f32.mrb[0].mxu0
        %v1012 = vpop.f32.mrb[0].mxu0
        %v1013 = vadd.f32 0.0, %v1012
        %v1014 = vpop.f32.mrb[0].mxu0
        %1015 = vmatprep.mubr.bf16.mxu0 0
        %1016 = vmatmul.mubr.bf16.gmra.mrb[0].mxu0 %v424
        %v1017 = vpop.f32.mrb[0].mxu0
        %v1018 = vadd.f32 0.0, %v1017
        %v1019 = vpop.f32.mrb[0].mxu0
        %v1020 = vpop.f32.mrb[0].mxu0
        %v1021 = vadd.f32 0.0, %v1020
        %v1022 = vpop.f32.mrb[0].mxu0
        %1023 = vmatprep.mubr.bf16.mxu0 0
        %1024 = vmatmul.mubr.bf16.gmra.mrb[0].mxu0 %v425
        %v1025 = vpop.f32.mrb[0].mxu0
        %v1026 = vadd.f32 0.0, %v1025
        %v1027 = vpop.f32.mrb[0].mxu0
        %v1028 = vpop.f32.mrb[0].mxu0
        %v1029 = vadd.f32 0.0, %v1028
        %v1030 = vpop.f32.mrb[0].mxu0
        %1031 = vmatprep.mubr.bf16.mxu0 0
        %1032 = vmatmul.mubr.bf16.gmra.mrb[0].mxu0 %v426
        %v1033 = vpop.f32.mrb[0].mxu0
        %v1034 = vadd.f32 0.0, %v1033
        %v1035 = vpop.f32.mrb[0].mxu0
        %v1036 = vpop.f32.mrb[0].mxu0
        %v1037 = vadd.f32 0.0, %v1036
        %v1038 = vpop.f32.mrb[0].mxu0
        %1039 = vmatprep.mubr.bf16.mxu0 0
        %1040 = vmatmul.mubr.bf16.gmra.mrb[0].mxu0 %v427
        %v1041 = vpop.f32.mrb[0].mxu0
        %v1042 = vadd.f32 0.0, %v1041
        %v1043 = vpop.f32.mrb[0].mxu0
        %v1044 = vpop.f32.mrb[0].mxu0
        %v1045 = vadd.f32 0.0, %v1044
        %v1046 = vpop.f32.mrb[0].mxu0
        %1047 = vmatprep.mubr.bf16.mxu0 0
        %1048 = vmatmul.mubr.bf16.gmra.mrb[0].mxu0 %v428
        %v1049 = vpop.f32.mrb[0].mxu0
        %v1050 = vadd.f32 0.0, %v1049
        %v1051 = vpop.f32.mrb[0].mxu0
        %v1052 = vpop.f32.mrb[0].mxu0
        %v1053 = vadd.f32 0.0, %v1052
        %v1054 = vpop.f32.mrb[0].mxu0
        %1055 = vmatprep.mubr.bf16.mxu0 0
        %1056 = vmatmul.mubr.bf16.gmra.mrb[0].mxu0 %v429
        %v1057 = vpop.f32.mrb[0].mxu0
        %v1058 = vadd.f32 0.0, %v1057
        %v1059 = vpop.f32.mrb[0].mxu0
        %v1060 = vpop.f32.mrb[0].mxu0
        %v1061 = vadd.f32 0.0, %v1060
        %v1062 = vpop.f32.mrb[0].mxu0
        %1063 = vmatprep.mubr.bf16.mxu0 0
        %1064 = vmatmul.mubr.bf16.gmra.mrb[0].mxu0 %v430
        %v1065 = vpop.f32.mrb[0].mxu0
        %v1066 = vadd.f32 0.0, %v1065
        %v1067 = vpop.f32.mrb[0].mxu0
        %v1068 = vpop.f32.mrb[0].mxu0
        %v1069 = vadd.f32 0.0, %v1068
        %v1070 = vpop.f32.mrb[0].mxu0
        %1071 = vmatprep.mubr.bf16.mxu0 0
        %1072 = vmatmul.mubr.bf16.gmra.mrb[0].mxu0 %v431
        %v1073 = vpop.f32.mrb[0].mxu0
        %v1074 = vadd.f32 0.0, %v1073
        %v1075 = vpop.f32.mrb[0].mxu0
        %v1076 = vpop.f32.mrb[0].mxu0
        %v1077 = vadd.f32 0.0, %v1076
        %v1078 = vpop.f32.mrb[0].mxu0
        %1079 = vmatprep.mubr.bf16.mxu0 0
        %1080 = vmatmul.mubr.bf16.gmra.mrb[0].mxu0 %v432
        %v1081 = vpop.f32.mrb[0].mxu0
        %v1082 = vadd.f32 0.0, %v1081
        %v1083 = vpop.f32.mrb[0].mxu0
        %v1084 = vpop.f32.mrb[0].mxu0
        %v1085 = vadd.f32 0.0, %v1084
        %v1086 = vpop.f32.mrb[0].mxu0
        %1087 = vmatprep.mubr.bf16.mxu0 0
        %1088 = vmatmul.mubr.bf16.gmra.mrb[0].mxu0 %v433
        %v1089 = vpop.f32.mrb[0].mxu0
        %v1090 = vadd.f32 0.0, %v1089
        %v1091 = vpop.f32.mrb[0].mxu0
        %v1092 = vpop.f32.mrb[0].mxu0
        %v1093 = vadd.f32 0.0, %v1092
        %v1094 = vpop.f32.mrb[0].mxu0
        %1095 = vmatprep.mubr.bf16.mxu0 0
        %1096 = vmatmul.mubr.bf16.gmra.mrb[0].mxu0 %v434
        %v1097 = vpop.f32.mrb[0].mxu0
        %v1098 = vadd.f32 0.0, %v1097
        %v1099 = vpop.f32.mrb[0].mxu0
        %v1100 = vpop.f32.mrb[0].mxu0
        %v1101 = vadd.f32 0.0, %v1100
        %v1102 = vpop.f32.mrb[0].mxu0
        %1103 = vmatprep.mubr.bf16.mxu0 0
        %1104 = vmatmul.mubr.bf16.gmra.mrb[0].mxu0 %v435
        %v1105 = vpop.f32.mrb[0].mxu0
        %v1106 = vadd.f32 0.0, %v1105
        %v1107 = vpop.f32.mrb[0].mxu0
        %v1108 = vpop.f32.mrb[0].mxu0
        %v1109 = vadd.f32 0.0, %v1108
        %v1110 = vpop.f32.mrb[0].mxu0
        %1111 = vmatprep.mubr.bf16.mxu0 0
        %1112 = vmatmul.mubr.bf16.gmra.mrb[0].mxu0 %v436
        %v1113 = vpop.f32.mrb[0].mxu0
        %v1114 = vadd.f32 0.0, %v1113
        %v1115 = vpop.f32.mrb[0].mxu0
        %v1116 = vpop.f32.mrb[0].mxu0
        %v1117 = vadd.f32 0.0, %v1116
        %v1118 = vpop.f32.mrb[0].mxu0
        %1119 = vmatprep.mubr.bf16.mxu0 0
        %1120 = vmatmul.mubr.bf16.gmra.mrb[0].mxu0 %v437
        %v1121 = vpop.f32.mrb[0].mxu0
        %v1122 = vadd.f32 0.0, %v1121
        %v1123 = vpop.f32.mrb[0].mxu0
        %v1124 = vpop.f32.mrb[0].mxu0
        %v1125 = vadd.f32 0.0, %v1124
        %v1126 = vpop.f32.mrb[0].mxu0
        %1127 = vmatprep.mubr.bf16.mxu0 0
        %1128 = vmatmul.mubr.bf16.gmra.mrb[0].mxu0 %v438
        %v1129 = vpop.f32.mrb[0].mxu0
        %v1130 = vadd.f32 0.0, %v1129
        %v1131 = vpop.f32.mrb[0].mxu0
        %v1132 = vpop.f32.mrb[0].mxu0
        %v1133 = vadd.f32 0.0, %v1132
        %v1134 = vpop.f32.mrb[0].mxu0
        %1135 = vmatprep.mubr.bf16.mxu0 0
        %1136 = vmatmul.mubr.bf16.gmra.mrb[0].mxu0 %v439
        %v1137 = vpop.f32.mrb[0].mxu0
        %v1138 = vadd.f32 0.0, %v1137
        %v1139 = vpop.f32.mrb[0].mxu0
        %v1140 = vpop.f32.mrb[0].mxu0
        %v1141 = vadd.f32 0.0, %v1140
        %v1142 = vpop.f32.mrb[0].mxu0
        %1143 = vmatprep.mubr.bf16.mxu0 0
        %1144 = vmatmul.mubr.bf16.gmra.mrb[0].mxu0 %v440
        %v1145 = vpop.f32.mrb[0].mxu0
        %v1146 = vadd.f32 0.0, %v1145
        %v1147 = vpop.f32.mrb[0].mxu0
        %v1148 = vpop.f32.mrb[0].mxu0
        %v1149 = vadd.f32 0.0, %v1148
        %v1150 = vpop.f32.mrb[0].mxu0
        %1151 = vmatprep.mubr.bf16.mxu0 0
        %1152 = vmatmul.mubr.bf16.gmra.mrb[0].mxu0 %v441
        %v1153 = vpop.f32.mrb[0].mxu0
        %v1154 = vadd.f32 0.0, %v1153
        %v1155 = vpop.f32.mrb[0].mxu0
        %v1156 = vpop.f32.mrb[0].mxu0
        %v1157 = vadd.f32 0.0, %v1156
        %v1158 = vpop.f32.mrb[0].mxu0
        %1159 = vmatprep.mubr.bf16.mxu0 0
        %1160 = vmatmul.mubr.bf16.gmra.mrb[0].mxu0 %v442
        %v1161 = vpop.f32.mrb[0].mxu0
        %v1162 = vadd.f32 0.0, %v1161
        %v1163 = vpop.f32.mrb[0].mxu0
        %v1164 = vpop.f32.mrb[0].mxu0
        %v1165 = vadd.f32 0.0, %v1164
        %v1166 = vpop.f32.mrb[0].mxu0
        %1167 = vmatprep.mubr.bf16.mxu0 0
        %1168 = vmatmul.mubr.bf16.gmra.mrb[0].mxu0 %v443
        %v1169 = vpop.f32.mrb[0].mxu0
        %v1170 = vadd.f32 0.0, %v1169
        %v1171 = vpop.f32.mrb[0].mxu0
        %v1172 = vpop.f32.mrb[0].mxu0
        %v1173 = vadd.f32 0.0, %v1172
        %v1174 = vpop.f32.mrb[0].mxu0
        %1175 = vmatprep.mubr.bf16.mxu0 0
        %1176 = vmatmul.mubr.bf16.gmra.mrb[0].mxu0 %v444
        %v1177 = vpop.f32.mrb[0].mxu0
        %v1178 = vadd.f32 0.0, %v1177
        %v1179 = vpop.f32.mrb[0].mxu0
        %v1180 = vpop.f32.mrb[0].mxu0
        %v1181 = vadd.f32 0.0, %v1180
        %v1182 = vpop.f32.mrb[0].mxu0
        %1183 = vmatprep.mubr.bf16.mxu0 0
        %1184 = vmatmul.mubr.bf16.gmra.mrb[0].mxu0 %v445
        %v1185 = vpop.f32.mrb[0].mxu0
        %v1186 = vadd.f32 0.0, %v1185
        %v1187 = vpop.f32.mrb[0].mxu0
        %v1188 = vpop.f32.mrb[0].mxu0
        %v1189 = vadd.f32 0.0, %v1188
        %v1190 = vpop.f32.mrb[0].mxu0
        %1191 = vmatprep.mubr.bf16.mxu0 0
        %1192 = vmatmul.mubr.bf16.gmra.mrb[0].mxu0 %v446
        %v1193 = vpop.f32.mrb[0].mxu0
        %v1194 = vadd.f32 0.0, %v1193
        %v1195 = vpop.f32.mrb[0].mxu0
        %v1196 = vpop.f32.mrb[0].mxu0
        %v1197 = vadd.f32 0.0, %v1196
        %v1198 = vpop.f32.mrb[0].mxu0
        %1199 = vmatprep.mubr.bf16.mxu0 0
        %1200 = vmatmul.mubr.bf16.gmra.mrb[0].mxu0 %v447
        %v1201 = vpop.f32.mrb[0].mxu0
        %v1202 = vadd.f32 0.0, %v1201
        %v1203 = vpop.f32.mrb[0].mxu0
        %v1204 = vpop.f32.mrb[0].mxu0
        %v1205 = vadd.f32 0.0, %v1204
        %v1206 = vpop.f32.mrb[0].mxu0
        %1207 = vmatprep.mubr.bf16.mxu0 0
        %1208 = vmatmul.mubr.bf16.gmra.mrb[0].mxu0 %v448
        %v1209 = vpop.f32.mrb[0].mxu0
        %v1210 = vadd.f32 0.0, %v1209
        %v1211 = vpop.f32.mrb[0].mxu0
        %v1212 = vpop.f32.mrb[0].mxu0
        %v1213 = vadd.f32 0.0, %v1212
        %v1214 = vpop.f32.mrb[0].mxu0
        %1215 = vmatprep.mubr.bf16.mxu0 0
        %1216 = vmatmul.mubr.bf16.gmra.mrb[0].mxu0 %v449
        %v1217 = vpop.f32.mrb[0].mxu0
        %v1218 = vadd.f32 0.0, %v1217
        %v1219 = vpop.f32.mrb[0].mxu0
        %v1220 = vpop.f32.mrb[0].mxu0
        %v1221 = vadd.f32 0.0, %v1220
        %v1222 = vpop.f32.mrb[0].mxu0
        %1223 = vmatprep.mubr.bf16.mxu0 0
        %1224 = vmatmul.mubr.bf16.gmra.mrb[0].mxu0 %v450
        %v1225 = vpop.f32.mrb[0].mxu0
        %v1226 = vadd.f32 0.0, %v1225
        %v1227 = vpop.f32.mrb[0].mxu0
        %v1228 = vpop.f32.mrb[0].mxu0
        %v1229 = vadd.f32 0.0, %v1228
        %v1230 = vpop.f32.mrb[0].mxu0
        %1231 = vmatprep.mubr.bf16.mxu0 0
        %1232 = vmatmul.mubr.bf16.gmra.mrb[0].mxu0 %v451
        %v1233 = vpop.f32.mrb[0].mxu0
        %v1234 = vadd.f32 0.0, %v1233
        %v1235 = vpop.f32.mrb[0].mxu0
        %v1236 = vpop.f32.mrb[0].mxu0
        %v1237 = vadd.f32 0.0, %v1236
        %v1238 = vpop.f32.mrb[0].mxu0
        %1239 = vmatprep.mubr.bf16.mxu0 0
        %1240 = vmatmul.mubr.bf16.gmra.mrb[0].mxu0 %v452
        %v1241 = vpop.f32.mrb[0].mxu0
        %v1242 = vadd.f32 0.0, %v1241
        %v1243 = vpop.f32.mrb[0].mxu0
        %v1244 = vpop.f32.mrb[0].mxu0
        %v1245 = vadd.f32 0.0, %v1244
        %v1246 = vpop.f32.mrb[0].mxu0
        %1247 = vmatprep.mubr.bf16.mxu0 0
        %1248 = vmatmul.mubr.bf16.gmra.mrb[0].mxu0 %v453
        %v1249 = vpop.f32.mrb[0].mxu0
        %v1250 = vadd.f32 0.0, %v1249
        %v1251 = vpop.f32.mrb[0].mxu0
        %v1252 = vpop.f32.mrb[0].mxu0
        %v1253 = vadd.f32 0.0, %v1252
        %v1254 = vpop.f32.mrb[0].mxu0
        %1255 = vdwg.mxu0
        %v1256 = vpack.c.bf16 %v653, %v649
        %v1257 = vpack.c.bf16 %v655, %v651
        %v1258 = vpack.c.bf16 %v1005, %v1002
        %v1259 = vpack.c.bf16 %v663, %v659
        %v1260 = vpack.c.bf16 %v665, %v661
        %v1261 = vpack.c.bf16 %v1013, %v1010
        %v1262 = vpack.c.bf16 %v673, %v669
        %v1263 = vpack.c.bf16 %v675, %v671
        %v1264 = vpack.c.bf16 %v1021, %v1018
        %v1265 = vpack.c.bf16 %v683, %v679
        %v1266 = vpack.c.bf16 %v685, %v681
        %v1267 = vpack.c.bf16 %v1029, %v1026
        %v1268 = vpack.c.bf16 %v693, %v689
        %v1269 = vpack.c.bf16 %v695, %v691
        %v1270 = vpack.c.bf16 %v1037, %v1034
        %v1271 = vpack.c.bf16 %v703, %v699
        %v1272 = vpack.c.bf16 %v705, %v701
        %v1273 = vpack.c.bf16 %v1045, %v1042
        %v1274 = vpack.c.bf16 %v713, %v709
        %v1275 = vpack.c.bf16 %v715, %v711
        %v1276 = vpack.c.bf16 %v1053, %v1050
        %v1277 = vpack.c.bf16 %v723, %v719
        %v1278 = vpack.c.bf16 %v725, %v721
        %v1279 = vpack.c.bf16 %v1061, %v1058
        %v1280 = vpack.c.bf16 %v733, %v729
        %v1281 = vpack.c.bf16 %v735, %v731
        %v1282 = vpack.c.bf16 %v1069, %v1066
        %v1283 = vpack.c.bf16 %v743, %v739
        %v1284 = vpack.c.bf16 %v745, %v741
        %v1285 = vpack.c.bf16 %v1077, %v1074
        %v1286 = vpack.c.bf16 %v753, %v749
        %v1287 = vpack.c.bf16 %v755, %v751
        %v1288 = vpack.c.bf16 %v1085, %v1082
        %v1289 = vpack.c.bf16 %v763, %v759
        %v1290 = vpack.c.bf16 %v765, %v761
        %v1291 = vpack.c.bf16 %v1093, %v1090
        %v1292 = vpack.c.bf16 %v773, %v769
        %v1293 = vpack.c.bf16 %v775, %v771
        %v1294 = vpack.c.bf16 %v1101, %v1098
        %v1295 = vpack.c.bf16 %v783, %v779
        %v1296 = vpack.c.bf16 %v785, %v781
        %v1297 = vpack.c.bf16 %v1109, %v1106
        %v1298 = vpack.c.bf16 %v793, %v789
        %v1299 = vpack.c.bf16 %v795, %v791
        %v1300 = vpack.c.bf16 %v1117, %v1114
        %v1301 = vpack.c.bf16 %v803, %v799
        %v1302 = vpack.c.bf16 %v805, %v801
        %v1303 = vpack.c.bf16 %v1125, %v1122
        %v1304 = vpack.c.bf16 %v813, %v809
        %v1305 = vpack.c.bf16 %v815, %v811
        %v1306 = vpack.c.bf16 %v1133, %v1130
        %v1307 = vpack.c.bf16 %v823, %v819
        %v1308 = vpack.c.bf16 %v825, %v821
        %v1309 = vpack.c.bf16 %v1141, %v1138
        %v1310 = vpack.c.bf16 %v833, %v829
        %v1311 = vpack.c.bf16 %v835, %v831
        %v1312 = vpack.c.bf16 %v1149, %v1146
        %v1313 = vpack.c.bf16 %v843, %v839
        %v1314 = vpack.c.bf16 %v845, %v841
        %v1315 = vpack.c.bf16 %v1157, %v1154
        %v1316 = vpack.c.bf16 %v853, %v849
        %v1317 = vpack.c.bf16 %v855, %v851
        %v1318 = vpack.c.bf16 %v1165, %v1162
        %v1319 = vpack.c.bf16 %v863, %v859
        %v1320 = vpack.c.bf16 %v865, %v861
        %v1321 = vpack.c.bf16 %v1173, %v1170
        %v1322 = vpack.c.bf16 %v873, %v869
        %v1323 = vpack.c.bf16 %v875, %v871
        %v1324 = vpack.c.bf16 %v1181, %v1178
        %v1325 = vpack.c.bf16 %v883, %v879
        %v1326 = vpack.c.bf16 %v885, %v881
        %v1327 = vpack.c.bf16 %v1189, %v1186
        %v1328 = vpack.c.bf16 %v893, %v889
        %v1329 = vpack.c.bf16 %v895, %v891
        %v1330 = vpack.c.bf16 %v1197, %v1194
        %v1331 = vpack.c.bf16 %v903, %v899
        %v1332 = vpack.c.bf16 %v905, %v901
        %v1333 = vpack.c.bf16 %v1205, %v1202
        %v1334 = vpack.c.bf16 %v913, %v909
        %v1335 = vpack.c.bf16 %v915, %v911
        %v1336 = vpack.c.bf16 %v1213, %v1210
        %v1337 = vpack.c.bf16 %v923, %v919
        %v1338 = vpack.c.bf16 %v925, %v921
        %v1339 = vpack.c.bf16 %v1221, %v1218
        %v1340 = vpack.c.bf16 %v933, %v929
        %v1341 = vpack.c.bf16 %v935, %v931
        %v1342 = vpack.c.bf16 %v1229, %v1226
        %v1343 = vpack.c.bf16 %v943, %v939
        %v1344 = vpack.c.bf16 %v945, %v941
        %v1345 = vpack.c.bf16 %v1237, %v1234
        %v1346 = vpack.c.bf16 %v953, %v949
        %v1347 = vpack.c.bf16 %v955, %v951
        %v1348 = vpack.c.bf16 %v1245, %v1242
        %v1349 = vpack.c.bf16 %v963, %v959
        %v1350 = vpack.c.bf16 %v965, %v961
        %v1351 = vpack.c.bf16 %v1253, %v1250
        %v1448 = vunpack.c.l.b16 %v1256
        %v1449 = vunpack.c.l.b16 %v1257
        %v1450 = vunpack.c.l.b16 %v1258
        %v1451 = vunpack.c.h.b16 %v1256
        %v1452 = vunpack.c.h.b16 %v1257
        %v1453 = vunpack.c.h.b16 %v1258
        %v1454 = vunpack.c.l.b16 %v1259
        %v1455 = vunpack.c.l.b16 %v1260
        %v1456 = vunpack.c.l.b16 %v1261
        %v1457 = vunpack.c.h.b16 %v1259
        %v1458 = vunpack.c.h.b16 %v1260
        %v1459 = vunpack.c.h.b16 %v1261
        %v1460 = vunpack.c.l.b16 %v1262
        %v1461 = vunpack.c.l.b16 %v1263
        %v1462 = vunpack.c.l.b16 %v1264
        %v1463 = vunpack.c.h.b16 %v1262
        %v1464 = vunpack.c.h.b16 %v1263
        %v1465 = vunpack.c.h.b16 %v1264
        %v1466 = vunpack.c.l.b16 %v1265
        %v1467 = vunpack.c.l.b16 %v1266
        %v1468 = vunpack.c.l.b16 %v1267
        %v1469 = vunpack.c.h.b16 %v1265
        %v1470 = vunpack.c.h.b16 %v1266
        %v1471 = vunpack.c.h.b16 %v1267
        %v1472 = vunpack.c.l.b16 %v1268
        %v1473 = vunpack.c.l.b16 %v1269
        %v1474 = vunpack.c.l.b16 %v1270
        %v1475 = vunpack.c.h.b16 %v1268
        %v1476 = vunpack.c.h.b16 %v1269
        %v1477 = vunpack.c.h.b16 %v1270
        %v1478 = vunpack.c.l.b16 %v1271
        %v1479 = vunpack.c.l.b16 %v1272
        %v1480 = vunpack.c.l.b16 %v1273
        %v1481 = vunpack.c.h.b16 %v1271
        %v1482 = vunpack.c.h.b16 %v1272
        %v1483 = vunpack.c.h.b16 %v1273
        %v1484 = vunpack.c.l.b16 %v1274
        %v1485 = vunpack.c.l.b16 %v1275
        %v1486 = vunpack.c.l.b16 %v1276
        %v1487 = vunpack.c.h.b16 %v1274
        %v1488 = vunpack.c.h.b16 %v1275
        %v1489 = vunpack.c.h.b16 %v1276
        %v1490 = vunpack.c.l.b16 %v1277
        %v1491 = vunpack.c.l.b16 %v1278
        %v1492 = vunpack.c.l.b16 %v1279
        %v1493 = vunpack.c.h.b16 %v1277
        %v1494 = vunpack.c.h.b16 %v1278
        %v1495 = vunpack.c.h.b16 %v1279
        %v1496 = vunpack.c.l.b16 %v1280
        %v1497 = vunpack.c.l.b16 %v1281
        %v1498 = vunpack.c.l.b16 %v1282
        %v1499 = vunpack.c.h.b16 %v1280
        %v1500 = vunpack.c.h.b16 %v1281
        %v1501 = vunpack.c.h.b16 %v1282
        %v1502 = vunpack.c.l.b16 %v1283
        %v1503 = vunpack.c.l.b16 %v1284
        %v1504 = vunpack.c.l.b16 %v1285
        %v1505 = vunpack.c.h.b16 %v1283
        %v1506 = vunpack.c.h.b16 %v1284
        %v1507 = vunpack.c.h.b16 %v1285
        %v1508 = vunpack.c.l.b16 %v1286
        %v1509 = vunpack.c.l.b16 %v1287
        %v1510 = vunpack.c.l.b16 %v1288
        %v1511 = vunpack.c.h.b16 %v1286
        %v1512 = vunpack.c.h.b16 %v1287
        %v1513 = vunpack.c.h.b16 %v1288
        %v1514 = vunpack.c.l.b16 %v1289
        %v1515 = vunpack.c.l.b16 %v1290
        %v1516 = vunpack.c.l.b16 %v1291
        %v1517 = vunpack.c.h.b16 %v1289
        %v1518 = vunpack.c.h.b16 %v1290
        %v1519 = vunpack.c.h.b16 %v1291
        %v1520 = vunpack.c.l.b16 %v1292
        %v1521 = vunpack.c.l.b16 %v1293
        %v1522 = vunpack.c.l.b16 %v1294
        %v1523 = vunpack.c.h.b16 %v1292
        %v1524 = vunpack.c.h.b16 %v1293
        %v1525 = vunpack.c.h.b16 %v1294
        %v1526 = vunpack.c.l.b16 %v1295
        %v1527 = vunpack.c.l.b16 %v1296
        %v1528 = vunpack.c.l.b16 %v1297
        %v1529 = vunpack.c.h.b16 %v1295
        %v1530 = vunpack.c.h.b16 %v1296
        %v1531 = vunpack.c.h.b16 %v1297
        %v1532 = vunpack.c.l.b16 %v1298
        %v1533 = vunpack.c.l.b16 %v1299
        %v1534 = vunpack.c.l.b16 %v1300
        %v1535 = vunpack.c.h.b16 %v1298
        %v1536 = vunpack.c.h.b16 %v1299
        %v1537 = vunpack.c.h.b16 %v1300
        %v1538 = vunpack.c.l.b16 %v1301
        %v1539 = vunpack.c.l.b16 %v1302
        %v1540 = vunpack.c.l.b16 %v1303
        %v1541 = vunpack.c.h.b16 %v1301
        %v1542 = vunpack.c.h.b16 %v1302
        %v1543 = vunpack.c.h.b16 %v1303
        %v1544 = vunpack.c.l.b16 %v1304
        %v1545 = vunpack.c.l.b16 %v1305
        %v1546 = vunpack.c.l.b16 %v1306
        %v1547 = vunpack.c.h.b16 %v1304
        %v1548 = vunpack.c.h.b16 %v1305
        %v1549 = vunpack.c.h.b16 %v1306
        %v1550 = vunpack.c.l.b16 %v1307
        %v1551 = vunpack.c.l.b16 %v1308
        %v1552 = vunpack.c.l.b16 %v1309
        %v1553 = vunpack.c.h.b16 %v1307
        %v1554 = vunpack.c.h.b16 %v1308
        %v1555 = vunpack.c.h.b16 %v1309
        %v1556 = vunpack.c.l.b16 %v1310
        %v1557 = vunpack.c.l.b16 %v1311
        %v1558 = vunpack.c.l.b16 %v1312
        %v1559 = vunpack.c.h.b16 %v1310
        %v1560 = vunpack.c.h.b16 %v1311
        %v1561 = vunpack.c.h.b16 %v1312
        %v1562 = vunpack.c.l.b16 %v1313
        %v1563 = vunpack.c.l.b16 %v1314
        %v1564 = vunpack.c.l.b16 %v1315
        %v1565 = vunpack.c.h.b16 %v1313
        %v1566 = vunpack.c.h.b16 %v1314
        %v1567 = vunpack.c.h.b16 %v1315
        %v1568 = vunpack.c.l.b16 %v1316
        %v1569 = vunpack.c.l.b16 %v1317
        %v1570 = vunpack.c.l.b16 %v1318
        %v1571 = vunpack.c.h.b16 %v1316
        %v1572 = vunpack.c.h.b16 %v1317
        %v1573 = vunpack.c.h.b16 %v1318
        %v1574 = vunpack.c.l.b16 %v1319
        %v1575 = vunpack.c.l.b16 %v1320
        %v1576 = vunpack.c.l.b16 %v1321
        %v1577 = vunpack.c.h.b16 %v1319
        %v1578 = vunpack.c.h.b16 %v1320
        %v1579 = vunpack.c.h.b16 %v1321
        %v1580 = vunpack.c.l.b16 %v1322
        %v1581 = vunpack.c.l.b16 %v1323
        %v1582 = vunpack.c.l.b16 %v1324
        %v1583 = vunpack.c.h.b16 %v1322
        %v1584 = vunpack.c.h.b16 %v1323
        %v1585 = vunpack.c.h.b16 %v1324
        %v1586 = vunpack.c.l.b16 %v1325
        %v1587 = vunpack.c.l.b16 %v1326
        %v1588 = vunpack.c.l.b16 %v1327
        %v1589 = vunpack.c.h.b16 %v1325
        %v1590 = vunpack.c.h.b16 %v1326
        %v1591 = vunpack.c.h.b16 %v1327
        %v1592 = vunpack.c.l.b16 %v1328
        %v1593 = vunpack.c.l.b16 %v1329
        %v1594 = vunpack.c.l.b16 %v1330
        %v1595 = vunpack.c.h.b16 %v1328
        %v1596 = vunpack.c.h.b16 %v1329
        %v1597 = vunpack.c.h.b16 %v1330
        %v1598 = vunpack.c.l.b16 %v1331
        %v1599 = vunpack.c.l.b16 %v1332
        %v1600 = vunpack.c.l.b16 %v1333
        %v1601 = vunpack.c.h.b16 %v1331
        %v1602 = vunpack.c.h.b16 %v1332
        %v1603 = vunpack.c.h.b16 %v1333
        %v1604 = vunpack.c.l.b16 %v1334
        %v1605 = vunpack.c.l.b16 %v1335
        %v1606 = vunpack.c.l.b16 %v1336
        %v1607 = vunpack.c.h.b16 %v1334
        %v1608 = vunpack.c.h.b16 %v1335
        %v1609 = vunpack.c.h.b16 %v1336
        %v1610 = vunpack.c.l.b16 %v1337
        %v1611 = vunpack.c.l.b16 %v1338
        %v1612 = vunpack.c.l.b16 %v1339
        %v1613 = vunpack.c.h.b16 %v1337
        %v1614 = vunpack.c.h.b16 %v1338
        %v1615 = vunpack.c.h.b16 %v1339
        %v1616 = vunpack.c.l.b16 %v1340
        %v1617 = vunpack.c.l.b16 %v1341
        %v1618 = vunpack.c.l.b16 %v1342
        %v1619 = vunpack.c.h.b16 %v1340
        %v1620 = vunpack.c.h.b16 %v1341
        %v1621 = vunpack.c.h.b16 %v1342
        %v1622 = vunpack.c.l.b16 %v1343
        %v1623 = vunpack.c.l.b16 %v1344
        %v1624 = vunpack.c.l.b16 %v1345
        %v1625 = vunpack.c.h.b16 %v1343
        %v1626 = vunpack.c.h.b16 %v1344
        %v1627 = vunpack.c.h.b16 %v1345
        %v1628 = vunpack.c.l.b16 %v1346
        %v1629 = vunpack.c.l.b16 %v1347
        %v1630 = vunpack.c.l.b16 %v1348
        %v1631 = vunpack.c.h.b16 %v1346
        %v1632 = vunpack.c.h.b16 %v1347
        %v1633 = vunpack.c.h.b16 %v1348
        %v1634 = vunpack.c.l.b16 %v1349
        %v1635 = vunpack.c.l.b16 %v1350
        %v1636 = vunpack.c.l.b16 %v1351
        %v1637 = vunpack.c.h.b16 %v1349
        %v1638 = vunpack.c.h.b16 %v1350
        %v1639 = vunpack.c.h.b16 %v1351
        %v1640 = vpack.c.b16 %v1449, %v1448
        %v1641 = vpack.c.b16 %v1450, %v1450
        %v1642 = vpack.c.b16 %v1452, %v1451
        %v1643 = vpack.c.b16 %v1453, %v1453
        %v1644 = vpack.c.b16 %v1455, %v1454
        %v1645 = vpack.c.b16 %v1456, %v1456
        %v1646 = vpack.c.b16 %v1458, %v1457
        %v1647 = vpack.c.b16 %v1459, %v1459
        %v1648 = vpack.c.b16 %v1461, %v1460
        %v1649 = vpack.c.b16 %v1462, %v1462
        %v1650 = vpack.c.b16 %v1464, %v1463
        %v1651 = vpack.c.b16 %v1465, %v1465
        %v1652 = vpack.c.b16 %v1467, %v1466
        %v1653 = vpack.c.b16 %v1468, %v1468
        %v1654 = vpack.c.b16 %v1470, %v1469
        %v1655 = vpack.c.b16 %v1471, %v1471
        %v1656 = vpack.c.b16 %v1473, %v1472
        %v1657 = vpack.c.b16 %v1474, %v1474
        %v1658 = vpack.c.b16 %v1476, %v1475
        %v1659 = vpack.c.b16 %v1477, %v1477
        %v1660 = vpack.c.b16 %v1479, %v1478
        %v1661 = vpack.c.b16 %v1480, %v1480
        %v1662 = vpack.c.b16 %v1482, %v1481
        %v1663 = vpack.c.b16 %v1483, %v1483
        %v1664 = vpack.c.b16 %v1485, %v1484
        %v1665 = vpack.c.b16 %v1486, %v1486
        %v1666 = vpack.c.b16 %v1488, %v1487
        %v1667 = vpack.c.b16 %v1489, %v1489
        %v1668 = vpack.c.b16 %v1491, %v1490
        %v1669 = vpack.c.b16 %v1492, %v1492
        %v1670 = vpack.c.b16 %v1494, %v1493
        %v1671 = vpack.c.b16 %v1495, %v1495
        %v1672 = vpack.c.b16 %v1497, %v1496
        %v1673 = vpack.c.b16 %v1498, %v1498
        %v1674 = vpack.c.b16 %v1500, %v1499
        %v1675 = vpack.c.b16 %v1501, %v1501
        %v1676 = vpack.c.b16 %v1503, %v1502
        %v1677 = vpack.c.b16 %v1504, %v1504
        %v1678 = vpack.c.b16 %v1506, %v1505
        %v1679 = vpack.c.b16 %v1507, %v1507
        %v1680 = vpack.c.b16 %v1509, %v1508
        %v1681 = vpack.c.b16 %v1510, %v1510
        %v1682 = vpack.c.b16 %v1512, %v1511
        %v1683 = vpack.c.b16 %v1513, %v1513
        %v1684 = vpack.c.b16 %v1515, %v1514
        %v1685 = vpack.c.b16 %v1516, %v1516
        %v1686 = vpack.c.b16 %v1518, %v1517
        %v1687 = vpack.c.b16 %v1519, %v1519
        %v1688 = vpack.c.b16 %v1521, %v1520
        %v1689 = vpack.c.b16 %v1522, %v1522
        %v1690 = vpack.c.b16 %v1524, %v1523
        %v1691 = vpack.c.b16 %v1525, %v1525
        %v1692 = vpack.c.b16 %v1527, %v1526
        %v1693 = vpack.c.b16 %v1528, %v1528
        %v1694 = vpack.c.b16 %v1530, %v1529
        %v1695 = vpack.c.b16 %v1531, %v1531
        %v1696 = vpack.c.b16 %v1533, %v1532
        %v1697 = vpack.c.b16 %v1534, %v1534
        %v1698 = vpack.c.b16 %v1536, %v1535
        %v1699 = vpack.c.b16 %v1537, %v1537
        %v1700 = vpack.c.b16 %v1539, %v1538
        %v1701 = vpack.c.b16 %v1540, %v1540
        %v1702 = vpack.c.b16 %v1542, %v1541
        %v1703 = vpack.c.b16 %v1543, %v1543
        %v1704 = vpack.c.b16 %v1545, %v1544
        %v1705 = vpack.c.b16 %v1546, %v1546
        %v1706 = vpack.c.b16 %v1548, %v1547
        %v1707 = vpack.c.b16 %v1549, %v1549
        %v1708 = vpack.c.b16 %v1551, %v1550
        %v1709 = vpack.c.b16 %v1552, %v1552
        %v1710 = vpack.c.b16 %v1554, %v1553
        %v1711 = vpack.c.b16 %v1555, %v1555
        %v1712 = vpack.c.b16 %v1557, %v1556
        %v1713 = vpack.c.b16 %v1558, %v1558
        %v1714 = vpack.c.b16 %v1560, %v1559
        %v1715 = vpack.c.b16 %v1561, %v1561
        %v1716 = vpack.c.b16 %v1563, %v1562
        %v1717 = vpack.c.b16 %v1564, %v1564
        %v1718 = vpack.c.b16 %v1566, %v1565
        %v1719 = vpack.c.b16 %v1567, %v1567
        %v1720 = vpack.c.b16 %v1569, %v1568
        %v1721 = vpack.c.b16 %v1570, %v1570
        %v1722 = vpack.c.b16 %v1572, %v1571
        %v1723 = vpack.c.b16 %v1573, %v1573
        %v1724 = vpack.c.b16 %v1575, %v1574
        %v1725 = vpack.c.b16 %v1576, %v1576
        %v1726 = vpack.c.b16 %v1578, %v1577
        %v1727 = vpack.c.b16 %v1579, %v1579
        %v1728 = vpack.c.b16 %v1581, %v1580
        %v1729 = vpack.c.b16 %v1582, %v1582
        %v1730 = vpack.c.b16 %v1584, %v1583
        %v1731 = vpack.c.b16 %v1585, %v1585
        %v1732 = vpack.c.b16 %v1587, %v1586
        %v1733 = vpack.c.b16 %v1588, %v1588
        %v1734 = vpack.c.b16 %v1590, %v1589
        %v1735 = vpack.c.b16 %v1591, %v1591
        %v1736 = vpack.c.b16 %v1593, %v1592
        %v1737 = vpack.c.b16 %v1594, %v1594
        %v1738 = vpack.c.b16 %v1596, %v1595
        %v1739 = vpack.c.b16 %v1597, %v1597
        %v1740 = vpack.c.b16 %v1599, %v1598
        %v1741 = vpack.c.b16 %v1600, %v1600
        %v1742 = vpack.c.b16 %v1602, %v1601
        %v1743 = vpack.c.b16 %v1603, %v1603
        %v1744 = vpack.c.b16 %v1605, %v1604
        %v1745 = vpack.c.b16 %v1606, %v1606
        %v1746 = vpack.c.b16 %v1608, %v1607
        %v1747 = vpack.c.b16 %v1609, %v1609
        %v1748 = vpack.c.b16 %v1611, %v1610
        %v1749 = vpack.c.b16 %v1612, %v1612
        %v1750 = vpack.c.b16 %v1614, %v1613
        %v1751 = vpack.c.b16 %v1615, %v1615
        %v1752 = vpack.c.b16 %v1617, %v1616
        %v1753 = vpack.c.b16 %v1618, %v1618
        %v1754 = vpack.c.b16 %v1620, %v1619
        %v1755 = vpack.c.b16 %v1621, %v1621
        %v1756 = vpack.c.b16 %v1623, %v1622
        %v1757 = vpack.c.b16 %v1624, %v1624
        %v1758 = vpack.c.b16 %v1626, %v1625
        %v1759 = vpack.c.b16 %v1627, %v1627
        %v1760 = vpack.c.b16 %v1629, %v1628
        %v1761 = vpack.c.b16 %v1630, %v1630
        %v1762 = vpack.c.b16 %v1632, %v1631
        %v1763 = vpack.c.b16 %v1633, %v1633
        %v1764 = vpack.c.b16 %v1635, %v1634
        %v1765 = vpack.c.b16 %v1636, %v1636
        %v1766 = vpack.c.b16 %v1638, %v1637
        %v1767 = vpack.c.b16 %v1639, %v1639
        %1896 = vst [vmem:[%s194] sm:$0xff] %v1640
        %1897 = vst [vmem:[%s194 + $0x8] sm:$0xf] %v1641
        %1898 = vst [vmem:[%s194 + $0xc] sm:$0xff] %v1642
        %1899 = vst [vmem:[%s194 + $0x14] sm:$0xf] %v1643
        %1900 = vst [vmem:[%s194 + $0x18] sm:$0xff] %v1644
        %1901 = vst [vmem:[%s194 + $0x20] sm:$0xf] %v1645
        %1902 = vst [vmem:[%s194 + $0x24] sm:$0xff] %v1646
        %1903 = vst [vmem:[%s194 + $0x2c] sm:$0xf] %v1647
        %1904 = vst [vmem:[%s194 + $0x30] sm:$0xff] %v1648
        %1905 = vst [vmem:[%s194 + $0x38] sm:$0xf] %v1649
        %1906 = vst [vmem:[%s194 + $0x3c] sm:$0xff] %v1650
        %1907 = vst [vmem:[%s194 + $0x44] sm:$0xf] %v1651
        %1908 = vst [vmem:[%s194 + $0x48] sm:$0xff] %v1652
        %1909 = vst [vmem:[%s194 + $0x50] sm:$0xf] %v1653
        %1910 = vst [vmem:[%s194 + $0x54] sm:$0xff] %v1654
        %1911 = vst [vmem:[%s194 + $0x5c] sm:$0xf] %v1655
        %1912 = vst [vmem:[%s194 + $0x60] sm:$0xff] %v1656
        %1913 = vst [vmem:[%s194 + $0x68] sm:$0xf] %v1657
        %1914 = vst [vmem:[%s194 + $0x6c] sm:$0xff] %v1658
        %1915 = vst [vmem:[%s194 + $0x74] sm:$0xf] %v1659
        %1916 = vst [vmem:[%s194 + $0x78] sm:$0xff] %v1660
        %1917 = vst [vmem:[%s194 + $0x80] sm:$0xf] %v1661
        %1918 = vst [vmem:[%s194 + $0x84] sm:$0xff] %v1662
        %1919 = vst [vmem:[%s194 + $0x8c] sm:$0xf] %v1663
        %1920 = vst [vmem:[%s194 + $0x90] sm:$0xff] %v1664
        %1921 = vst [vmem:[%s194 + $0x98] sm:$0xf] %v1665
        %1922 = vst [vmem:[%s194 + $0x9c] sm:$0xff] %v1666
        %1923 = vst [vmem:[%s194 + $0xa4] sm:$0xf] %v1667
        %1924 = vst [vmem:[%s194 + $0xa8] sm:$0xff] %v1668
        %1925 = vst [vmem:[%s194 + $0xb0] sm:$0xf] %v1669
        %1926 = vst [vmem:[%s194 + $0xb4] sm:$0xff] %v1670
        %1927 = vst [vmem:[%s194 + $0xbc] sm:$0xf] %v1671
        %1928 = vst [vmem:[%s194 + $0xc0] sm:$0xff] %v1672
        %1929 = vst [vmem:[%s194 + $0xc8] sm:$0xf] %v1673
        %1930 = vst [vmem:[%s194 + $0xcc] sm:$0xff] %v1674
        %1931 = vst [vmem:[%s194 + $0xd4] sm:$0xf] %v1675
        %1932 = vst [vmem:[%s194 + $0xd8] sm:$0xff] %v1676
        %1933 = vst [vmem:[%s194 + $0xe0] sm:$0xf] %v1677
        %1934 = vst [vmem:[%s194 + $0xe4] sm:$0xff] %v1678
        %1935 = vst [vmem:[%s194 + $0xec] sm:$0xf] %v1679
        %1936 = vst [vmem:[%s194 + $0xf0] sm:$0xff] %v1680
        %1937 = vst [vmem:[%s194 + $0xf8] sm:$0xf] %v1681
        %1938 = vst [vmem:[%s194 + $0xfc] sm:$0xff] %v1682
        %1939 = vst [vmem:[%s194 + $0x104] sm:$0xf] %v1683
        %1940 = vst [vmem:[%s194 + $0x108] sm:$0xff] %v1684
        %1941 = vst [vmem:[%s194 + $0x110] sm:$0xf] %v1685
        %1942 = vst [vmem:[%s194 + $0x114] sm:$0xff] %v1686
        %1943 = vst [vmem:[%s194 + $0x11c] sm:$0xf] %v1687
        %1944 = vst [vmem:[%s194 + $0x120] sm:$0xff] %v1688
        %1945 = vst [vmem:[%s194 + $0x128] sm:$0xf] %v1689
        %1946 = vst [vmem:[%s194 + $0x12c] sm:$0xff] %v1690
        %1947 = vst [vmem:[%s194 + $0x134] sm:$0xf] %v1691
        %1948 = vst [vmem:[%s194 + $0x138] sm:$0xff] %v1692
        %1949 = vst [vmem:[%s194 + $0x140] sm:$0xf] %v1693
        %1950 = vst [vmem:[%s194 + $0x144] sm:$0xff] %v1694
        %1951 = vst [vmem:[%s194 + $0x14c] sm:$0xf] %v1695
        %1952 = vst [vmem:[%s194 + $0x150] sm:$0xff] %v1696
        %1953 = vst [vmem:[%s194 + $0x158] sm:$0xf] %v1697
        %1954 = vst [vmem:[%s194 + $0x15c] sm:$0xff] %v1698
        %1955 = vst [vmem:[%s194 + $0x164] sm:$0xf] %v1699
        %1956 = vst [vmem:[%s194 + $0x168] sm:$0xff] %v1700
        %1957 = vst [vmem:[%s194 + $0x170] sm:$0xf] %v1701
        %1958 = vst [vmem:[%s194 + $0x174] sm:$0xff] %v1702
        %1959 = vst [vmem:[%s194 + $0x17c] sm:$0xf] %v1703
        %1960 = vst [vmem:[%s194 + $0x180] sm:$0xff] %v1704
        %1961 = vst [vmem:[%s194 + $0x188] sm:$0xf] %v1705
        %1962 = vst [vmem:[%s194 + $0x18c] sm:$0xff] %v1706
        %1963 = vst [vmem:[%s194 + $0x194] sm:$0xf] %v1707
        %1964 = vst [vmem:[%s194 + $0x198] sm:$0xff] %v1708
        %1965 = vst [vmem:[%s194 + $0x1a0] sm:$0xf] %v1709
        %1966 = vst [vmem:[%s194 + $0x1a4] sm:$0xff] %v1710
        %1967 = vst [vmem:[%s194 + $0x1ac] sm:$0xf] %v1711
        %1968 = vst [vmem:[%s194 + $0x1b0] sm:$0xff] %v1712
        %1969 = vst [vmem:[%s194 + $0x1b8] sm:$0xf] %v1713
        %1970 = vst [vmem:[%s194 + $0x1bc] sm:$0xff] %v1714
        %1971 = vst [vmem:[%s194 + $0x1c4] sm:$0xf] %v1715
        %1972 = vst [vmem:[%s194 + $0x1c8] sm:$0xff] %v1716
        %1973 = vst [vmem:[%s194 + $0x1d0] sm:$0xf] %v1717
        %1974 = vst [vmem:[%s194 + $0x1d4] sm:$0xff] %v1718
        %1975 = vst [vmem:[%s194 + $0x1dc] sm:$0xf] %v1719
        %1976 = vst [vmem:[%s194 + $0x1e0] sm:$0xff] %v1720
        %1977 = vst [vmem:[%s194 + $0x1e8] sm:$0xf] %v1721
        %1978 = vst [vmem:[%s194 + $0x1ec] sm:$0xff] %v1722
        %1979 = vst [vmem:[%s194 + $0x1f4] sm:$0xf] %v1723
        %1980 = vst [vmem:[%s194 + $0x1f8] sm:$0xff] %v1724
        %1981 = vst [vmem:[%s194 + $0x200] sm:$0xf] %v1725
        %1982 = vst [vmem:[%s194 + $0x204] sm:$0xff] %v1726
        %1983 = vst [vmem:[%s194 + $0x20c] sm:$0xf] %v1727
        %1984 = vst [vmem:[%s194 + $0x210] sm:$0xff] %v1728
        %1985 = vst [vmem:[%s194 + $0x218] sm:$0xf] %v1729
        %1986 = vst [vmem:[%s194 + $0x21c] sm:$0xff] %v1730
        %1987 = vst [vmem:[%s194 + $0x224] sm:$0xf] %v1731
        %1988 = vst [vmem:[%s194 + $0x228] sm:$0xff] %v1732
        %1989 = vst [vmem:[%s194 + $0x230] sm:$0xf] %v1733
        %1990 = vst [vmem:[%s194 + $0x234] sm:$0xff] %v1734
        %1991 = vst [vmem:[%s194 + $0x23c] sm:$0xf] %v1735
        %1992 = vst [vmem:[%s194 + $0x240] sm:$0xff] %v1736
        %1993 = vst [vmem:[%s194 + $0x248] sm:$0xf] %v1737
        %1994 = vst [vmem:[%s194 + $0x24c] sm:$0xff] %v1738
        %1995 = vst [vmem:[%s194 + $0x254] sm:$0xf] %v1739
        %1996 = vst [vmem:[%s194 + $0x258] sm:$0xff] %v1740
        %1997 = vst [vmem:[%s194 + $0x260] sm:$0xf] %v1741
        %1998 = vst [vmem:[%s194 + $0x264] sm:$0xff] %v1742
        %1999 = vst [vmem:[%s194 + $0x26c] sm:$0xf] %v1743
        %2000 = vst [vmem:[%s194 + $0x270] sm:$0xff] %v1744
        %2001 = vst [vmem:[%s194 + $0x278] sm:$0xf] %v1745
        %2002 = vst [vmem:[%s194 + $0x27c] sm:$0xff] %v1746
        %2003 = vst [vmem:[%s194 + $0x284] sm:$0xf] %v1747
        %2004 = vst [vmem:[%s194 + $0x288] sm:$0xff] %v1748
        %2005 = vst [vmem:[%s194 + $0x290] sm:$0xf] %v1749
        %2006 = vst [vmem:[%s194 + $0x294] sm:$0xff] %v1750
        %2007 = vst [vmem:[%s194 + $0x29c] sm:$0xf] %v1751
        %2008 = vst [vmem:[%s194 + $0x2a0] sm:$0xff] %v1752
        %2009 = vst [vmem:[%s194 + $0x2a8] sm:$0xf] %v1753
        %2010 = vst [vmem:[%s194 + $0x2ac] sm:$0xff] %v1754
        %2011 = vst [vmem:[%s194 + $0x2b4] sm:$0xf] %v1755
        %2012 = vst [vmem:[%s194 + $0x2b8] sm:$0xff] %v1756
        %2013 = vst [vmem:[%s194 + $0x2c0] sm:$0xf] %v1757
        %2014 = vst [vmem:[%s194 + $0x2c4] sm:$0xff] %v1758
        %2015 = vst [vmem:[%s194 + $0x2cc] sm:$0xf] %v1759
        %2016 = vst [vmem:[%s194 + $0x2d0] sm:$0xff] %v1760
        %2017 = vst [vmem:[%s194 + $0x2d8] sm:$0xf] %v1761
        %2018 = vst [vmem:[%s194 + $0x2dc] sm:$0xff] %v1762
        %2019 = vst [vmem:[%s194 + $0x2e4] sm:$0xf] %v1763
        %2020 = vst [vmem:[%s194 + $0x2e8] sm:$0xff] %v1764
        %2021 = vst [vmem:[%s194 + $0x2f0] sm:$0xf] %v1765
        %2022 = vst [vmem:[%s194 + $0x2f4] sm:$0xff] %v1766
        %2023 = vst [vmem:[%s194 + $0x2fc] sm:$0xf] %v1767
        %s2024 = sand.u32 %s91, 1
        %s2025 = scalar_lea.sflag [#allocation4], %s2024
        %s2026 = sand.u32 %s91, 1
        %s2027 = smul.addr %s2026, 768
        %s2028 = scalar_lea.vmem [#allocation7], %s2027
        // Predicated region
        $region37: #{tpu_custom_call.1} parent=27 // pred_check
          %p2029 = pneg %p101
        $region38: #{tpu_custom_call.1} parent=27 // pred_check_branch
          %2031 = sbr.rel (%p2029) target = $region40
        $region39: #{tpu_custom_call.1} parent=27 // pred_region
          %s2032 = smul.u32 64, %s25
          %s2034 = ssub.s32 12288, 12288
          %2035 = vsyncadd %s2025, %s2034
          %s2036 = smul.addr %s2032, 3
          %s2037 = smul.addr %s24, 192
          %s2038 = sadd.s32 %s2036, %s2037
          %s2039 = smul.addr %s2038, 64
          %s2040 = scalar_lea.hbm %s2, %s2039
          %s2041 = sshll.u32 %s2028, 4
          %s2042 = int_to_ptr.vmem [resolvable:$true] %s2041
          %2047 = dma.vmem_to_hbm [thread:$0]  %s2042, 12288, %s2040, %s2025, 192, 192, 12
        $region40: #{tpu_custom_call.1} parent=27 // pred_fallthru
          _
      $region28: #{tpu_custom_call.1} parent=5 // pred_fallthru
        _
      %p2048 = scmp.le.s32.totalorder 2, %s15
      // Predicated region
      $region41: #{tpu_custom_call.1} parent=5 // pred_check
        %p2049 = pneg %p2048
      $region42: #{tpu_custom_call.1} parent=5 // pred_check_branch
        %2051 = sbr.rel (%p2049) target = $region44
      $region43: #{tpu_custom_call.1} parent=5 // pred_region
        %s2052 = ssub.s32 %s15, 2
        // Predicated region
        $region45: #{tpu_custom_call.1} parent=43 // pred_check
          %p2053 = pneg %p107
        $region46: #{tpu_custom_call.1} parent=43 // pred_check_branch
          %2055 = sbr.rel (%p2053) target = $region48
        $region47: #{tpu_custom_call.1} parent=43 // pred_region
          %s2056 = sand.u32 %s92, 1
          %s2057 = scalar_lea.sflag [#allocation4], %s2056
          %s2058 = sand.u32 %s92, 1
          %s2059 = smul.addr %s2058, 768
          %s2060 = scalar_lea.vmem [#allocation7], %s2059
          %2061 = dma.done %s2057, 12288
        $region48: #{tpu_custom_call.1} parent=43 // pred_fallthru
          _
      $region44: #{tpu_custom_call.1} parent=5 // pred_fallthru
        _
    $region6: #{tpu_custom_call.1} parent=1 // loop_footer
      %s19 = sadd.s32 1, %s15
    $region7: #{tpu_custom_call.1} parent=1 // loop_footer_branch
      %14 = sbr.rel target = $region3
    $region8: #{tpu_custom_call.1} parent=1 // loop_exit
      _
    %2062 = vsyncpa [#allocation3], 1
    %s2063 = scalar_lea.sflag [#allocation3], 1
    %2064 = vsyncpa %s2063, 1
    %2065 = vsyncpa [#allocation6], 1
    %2066 = vsyncpa [#allocation4], 1
    %s2067 = scalar_lea.sflag [#allocation4], 1
    %2068 = vsyncpa %s2067, 1

</llo_original>
